<compile_context>
chip_gen: v5e
topology: v5e:2x2
jax: 0.10.0
libtpu: 0.0.40
codegen_flags: <defaults>
</compile_context>

<pallas_src>
import functools
import math

import jax
import jax.numpy as jnp
from jax.experimental import pallas as pl
from jax.experimental.pallas import tpu as pltpu

# ---------------- small deterministic BERT config ----------------
# TODO(synk): the reference loads pretrained 'bert-base-chinese'; no file /
# network access here, so a small synthetic config with the same architecture
# and forward semantics is used instead.
VOCAB = 50
TYPE_VOCAB = 2
MAX_POS = 16
HIDDEN = 32
NUM_HEADS = 2
HEAD_DIM = HIDDEN // NUM_HEADS
INTERMEDIATE = 64
NUM_LAYERS = 2
NUM_LABELS = 2
LN_EPS = 1e-12

PARAMS_PER_LAYER = 12  # wqkv, bqkv, wo, bo, ln1_g, ln1_b, wi, bi, wf, bf, ln2_g, ln2_b
NUM_DATA_INPUTS = 9    # ids, segs, mask, labels, word_emb, pos_emb, type_emb, ln_g, ln_b
NUM_INPUTS = NUM_DATA_INPUTS + PARAMS_PER_LAYER * NUM_LAYERS + 4


# ---------------- in-kernel helpers (operate on values, stay in vregs) ----------------
def _layernorm(x, g, b):
    mean = jnp.mean(x, axis=-1, keepdims=True)
    xc = x - mean
    var = jnp.mean(xc * xc, axis=-1, keepdims=True)
    return xc * jax.lax.rsqrt(var + LN_EPS) * g + b


def _gelu(x):
    # TODO(synk): HF BERT uses exact (erf) GELU; tanh approximation used for
    # guaranteed Mosaic lowering (numerically very close, not a checkpoint).
    c = math.sqrt(2.0 / math.pi)
    return 0.5 * x * (1.0 + jnp.tanh(c * (x + 0.044715 * x * x * x)))


def _softmax_lastdim(x):
    m = jnp.max(x, axis=-1, keepdims=True)
    e = jnp.exp(x - m)
    return e * pl.reciprocal(jnp.sum(e, axis=-1, keepdims=True), approx=True)


# ---------------- single fused forward kernel ----------------
def _bert_fused_kernel(*refs, batch, seq):
    in_refs = refs[:NUM_INPUTS]
    loss_ref, logits_ref, probs_ref = refs[NUM_INPUTS:]

    (ids_ref, seg_ref, mask_ref, labels_ref,
     word_emb, pos_emb, type_emb, emb_ln_g, emb_ln_b) = in_refs[:NUM_DATA_INPUTS]
    layer_refs = in_refs[NUM_DATA_INPUTS:NUM_DATA_INPUTS + PARAMS_PER_LAYER * NUM_LAYERS]
    pool_w, pool_b, cls_w, cls_b = in_refs[NUM_DATA_INPUTS + PARAMS_PER_LAYER * NUM_LAYERS:]

    B, S = batch, seq
    BS = B * S
    scale = 1.0 / math.sqrt(HEAD_DIM)

    # ---- embeddings, fully in-kernel ----
    # word: one-hot(ids) @ word_emb  (BS, VOCAB) x (VOCAB, H)
    vocab_iota = jax.lax.broadcasted_iota(jnp.int32, (BS, VOCAB), 1)
    word_onehot = (ids_ref[...] == vocab_iota).astype(jnp.float32)
    word_part = jnp.dot(word_onehot, word_emb[...], preferred_element_type=jnp.float32)

    # position: rows 0..S-1 of the table, tiled across the batch (static slice)
    pos_part = jnp.concatenate([pos_emb[0:S, :]] * B, axis=0)               # (BS, H)

    # token type: TYPE_VOCAB == 2, so a simple select/lerp on the segment id
    segf = seg_ref[...].astype(jnp.float32)                                 # (BS, 1)
    type_part = type_emb[0:1, :] + segf * (type_emb[1:2, :] - type_emb[0:1, :])

    # embedding LayerNorm (no residual)
    x = _layernorm(word_part + pos_part + type_part,
                   emb_ln_g[...], emb_ln_b[...])                            # (BS, H)

    # HF-style additive attention mask, built in-kernel from the raw (B, S) mask
    bias = (1.0 - mask_ref[...]) * -10000.0                                 # (B, S)

    for li in range(NUM_LAYERS):
        (wqkv, bqkv, wo, bo, ln1_g, ln1_b,
         wi, bi, wf, bf, ln2_g, ln2_b) = layer_refs[li * PARAMS_PER_LAYER:
                                                    (li + 1) * PARAMS_PER_LAYER]

        # fused Q/K/V projection: one (BS, 3H) matmul instead of three
        qkv = jnp.dot(x, wqkv[...], preferred_element_type=jnp.float32) + bqkv[...]
        q = qkv[:, :HIDDEN]
        k = qkv[:, HIDDEN:2 * HIDDEN]
        v = qkv[:, 2 * HIDDEN:]

        # attention: static per-(batch, head) slices; everything stays in vregs
        ctx_rows = []
        for b in range(B):
            r0 = b * S
            bias_b = bias[b:b + 1, :]                                       # (1, S)
            head_ctx = []
            for h in range(NUM_HEADS):
                c0 = h * HEAD_DIM
                q_bh = q[r0:r0 + S, c0:c0 + HEAD_DIM]                       # (S, Dh)
                k_bh = k[r0:r0 + S, c0:c0 + HEAD_DIM]
                v_bh = v[r0:r0 + S, c0:c0 + HEAD_DIM]
                s_bh = jnp.einsum("qd,kd->qk", q_bh, k_bh,
                                  preferred_element_type=jnp.float32) * scale + bias_b
                p_bh = _softmax_lastdim(s_bh)                               # (S, S)
                head_ctx.append(jnp.dot(p_bh, v_bh,
                                        preferred_element_type=jnp.float32))
            ctx_rows.append(jnp.concatenate(head_ctx, axis=1))              # (S, H)
        ctx = jnp.concatenate(ctx_rows, axis=0)                             # (BS, H)

        attn_out = jnp.dot(ctx, wo[...], preferred_element_type=jnp.float32) + bo[...]
        x = _layernorm(attn_out + x, ln1_g[...], ln1_b[...])

        inter = _gelu(jnp.dot(x, wi[...], preferred_element_type=jnp.float32) + bi[...])
        ffn_out = jnp.dot(inter, wf[...], preferred_element_type=jnp.float32) + bf[...]
        x = _layernorm(ffn_out + x, ln2_g[...], ln2_b[...])

    # pooler ([CLS] token), classifier, softmax + mean cross-entropy
    cls_tok = jnp.concatenate([x[b * S:b * S + 1, :] for b in range(B)], axis=0)  # (B, H)
    pooled = jnp.tanh(jnp.dot(cls_tok, pool_w[...],
                              preferred_element_type=jnp.float32) + pool_b[...])
    logits = jnp.dot(pooled, cls_w[...],
                     preferred_element_type=jnp.float32) + cls_b[...]       # (B, C)

    label_iota = jax.lax.broadcasted_iota(jnp.int32, (B, NUM_LABELS), 1)
    onehot = (labels_ref[...] == label_iota).astype(jnp.float32)            # (B, C)

    m = jnp.max(logits, axis=-1, keepdims=True)
    e = jnp.exp(logits - m)
    ssum = jnp.sum(e, axis=-1, keepdims=True)
    probs = e * pl.reciprocal(ssum, approx=True)
    logp = (logits - m) - jnp.log(ssum)
    nll = -jnp.sum(onehot * logp, axis=-1, keepdims=True)                   # (B, 1)

    logits_ref[...] = logits
    probs_ref[...] = probs
    loss_ref[...] = jnp.sum(nll, axis=0, keepdims=True) * (1.0 / B)         # (1, 1) mean CE


# ---------------- parameters (deterministic synthetic init) ----------------
def init_params(key):
    keys = list(jax.random.split(key, 3 + NUM_LAYERS * 4 + 2))
    it = iter(keys)

    def nrm(shape):
        return 0.02 * jax.random.normal(next(it), shape, jnp.float32)

    ones_h = jnp.ones((HIDDEN,), jnp.float32)
    zeros_h = jnp.zeros((HIDDEN,), jnp.float32)

    params = {
        "word_emb": nrm((VOCAB, HIDDEN)),
        "pos_emb": nrm((MAX_POS, HIDDEN)),
        "type_emb": nrm((TYPE_VOCAB, HIDDEN)),
        "emb_ln_g": ones_h,
        "emb_ln_b": zeros_h,
        "layers": [],
    }
    for _ in range(NUM_LAYERS):
        params["layers"].append({
            "wqkv": nrm((HIDDEN, 3 * HIDDEN)),                 # fused Q|K|V
            "bqkv": jnp.zeros((3 * HIDDEN,), jnp.float32),
            "wo": nrm((HIDDEN, HIDDEN)), "bo": zeros_h,
            "ln1_g": ones_h, "ln1_b": zeros_h,
            "wi": nrm((HIDDEN, INTERMEDIATE)),
            "bi": jnp.zeros((INTERMEDIATE,), jnp.float32),
            "wf": nrm((INTERMEDIATE, HIDDEN)), "bf": zeros_h,
            "ln2_g": ones_h, "ln2_b": zeros_h,
        })
    params["pool_w"] = nrm((HIDDEN, HIDDEN))
    params["pool_b"] = zeros_h
    params["cls_w"] = nrm((HIDDEN, NUM_LABELS))
    params["cls_b"] = jnp.zeros((NUM_LABELS,), jnp.float32)
    return params


# ---------------- forward pass (matches BertModelTest.forward) ----------------
def bert_forward(params, batch_seqs, batch_seq_masks, batch_seq_segments, labels):
    B, S = batch_seqs.shape

    ids = batch_seqs.reshape(B * S, 1).astype(jnp.int32)
    segs = batch_seq_segments.reshape(B * S, 1).astype(jnp.int32)
    maskf = batch_seq_masks.astype(jnp.float32)                             # (B, S)
    lab = labels.reshape(B, 1).astype(jnp.int32)

    inputs = [ids, segs, maskf, lab,
              params["word_emb"], params["pos_emb"], params["type_emb"],
              params["emb_ln_g"].reshape(1, HIDDEN),
              params["emb_ln_b"].reshape(1, HIDDEN)]
    for layer in params["layers"]:
        inputs += [
            layer["wqkv"], layer["bqkv"].reshape(1, 3 * HIDDEN),
            layer["wo"], layer["bo"].reshape(1, HIDDEN),
            layer["ln1_g"].reshape(1, HIDDEN), layer["ln1_b"].reshape(1, HIDDEN),
            layer["wi"], layer["bi"].reshape(1, INTERMEDIATE),
            layer["wf"], layer["bf"].reshape(1, HIDDEN),
            layer["ln2_g"].reshape(1, HIDDEN), layer["ln2_b"].reshape(1, HIDDEN),
        ]
    inputs += [params["pool_w"], params["pool_b"].reshape(1, HIDDEN),
               params["cls_w"], params["cls_b"].reshape(1, NUM_LABELS)]
    assert len(inputs) == NUM_INPUTS

    vmem_spec = pl.BlockSpec(memory_space=pltpu.MemorySpace.VMEM)
    loss, logits, probabilities = pl.pallas_call(
        functools.partial(_bert_fused_kernel, batch=B, seq=S),
        out_shape=(jax.ShapeDtypeStruct((1, 1), jnp.float32),
                   jax.ShapeDtypeStruct((B, NUM_LABELS), jnp.float32),
                   jax.ShapeDtypeStruct((B, NUM_LABELS), jnp.float32)),
        in_specs=[vmem_spec] * NUM_INPUTS,
        out_specs=(vmem_spec, vmem_spec, vmem_spec),
    )(*inputs)
    return loss[0, 0], logits, probabilities


if __name__ == "__main__":
    key = jax.random.PRNGKey(0)
    pkey, dkey = jax.random.split(key)
    params = init_params(pkey)

    B, S = 2, 8
    k1, k2 = jax.random.split(dkey)
    batch_seqs = jax.random.randint(k1, (B, S), 0, VOCAB, dtype=jnp.int32)
    batch_seq_masks = jnp.ones((B, S), dtype=jnp.int32).at[1, 6:].set(0)
    batch_seq_segments = jnp.concatenate(
        [jnp.zeros((B, S // 2), jnp.int32), jnp.ones((B, S // 2), jnp.int32)], axis=1)
    labels = jax.random.randint(k2, (B,), 0, NUM_LABELS, dtype=jnp.int32)

    fwd = jax.jit(bert_forward)
    loss, logits, probabilities = fwd(params, batch_seqs, batch_seq_masks,
                                      batch_seq_segments, labels)
    jax.block_until_ready((loss, logits, probabilities))
    assert logits.shape == (B, NUM_LABELS)
    assert probabilities.shape == (B, NUM_LABELS)
    assert loss.shape == ()
    assert bool(jnp.isfinite(loss))
    print("KERNEL_OK")
</pallas_src>

<mosaic_0001>
module attributes {stable_mosaic.version = 11 : i64} {
  func.func @_bert_fused_kernel(%arg0: memref<16x1xi32, #tpu.memory_space<vmem>>, %arg1: memref<16x1xi32, #tpu.memory_space<vmem>>, %arg2: memref<2x8xf32, #tpu.memory_space<vmem>>, %arg3: memref<2x1xi32, #tpu.memory_space<vmem>>, %arg4: memref<50x32xf32, #tpu.memory_space<vmem>>, %arg5: memref<16x32xf32, #tpu.memory_space<vmem>>, %arg6: memref<2x32xf32, #tpu.memory_space<vmem>>, %arg7: memref<1x32xf32, #tpu.memory_space<vmem>>, %arg8: memref<1x32xf32, #tpu.memory_space<vmem>>, %arg9: memref<32x96xf32, #tpu.memory_space<vmem>>, %arg10: memref<1x96xf32, #tpu.memory_space<vmem>>, %arg11: memref<32x32xf32, #tpu.memory_space<vmem>>, %arg12: memref<1x32xf32, #tpu.memory_space<vmem>>, %arg13: memref<1x32xf32, #tpu.memory_space<vmem>>, %arg14: memref<1x32xf32, #tpu.memory_space<vmem>>, %arg15: memref<32x64xf32, #tpu.memory_space<vmem>>, %arg16: memref<1x64xf32, #tpu.memory_space<vmem>>, %arg17: memref<64x32xf32, #tpu.memory_space<vmem>>, %arg18: memref<1x32xf32, #tpu.memory_space<vmem>>, %arg19: memref<1x32xf32, #tpu.memory_space<vmem>>, %arg20: memref<1x32xf32, #tpu.memory_space<vmem>>, %arg21: memref<32x96xf32, #tpu.memory_space<vmem>>, %arg22: memref<1x96xf32, #tpu.memory_space<vmem>>, %arg23: memref<32x32xf32, #tpu.memory_space<vmem>>, %arg24: memref<1x32xf32, #tpu.memory_space<vmem>>, %arg25: memref<1x32xf32, #tpu.memory_space<vmem>>, %arg26: memref<1x32xf32, #tpu.memory_space<vmem>>, %arg27: memref<32x64xf32, #tpu.memory_space<vmem>>, %arg28: memref<1x64xf32, #tpu.memory_space<vmem>>, %arg29: memref<64x32xf32, #tpu.memory_space<vmem>>, %arg30: memref<1x32xf32, #tpu.memory_space<vmem>>, %arg31: memref<1x32xf32, #tpu.memory_space<vmem>>, %arg32: memref<1x32xf32, #tpu.memory_space<vmem>>, %arg33: memref<32x32xf32, #tpu.memory_space<vmem>>, %arg34: memref<1x32xf32, #tpu.memory_space<vmem>>, %arg35: memref<32x2xf32, #tpu.memory_space<vmem>>, %arg36: memref<1x2xf32, #tpu.memory_space<vmem>>, %arg37: memref<1x1xf32, #tpu.memory_space<vmem>>, %arg38: memref<2x2xf32, #tpu.memory_space<vmem>>, %arg39: memref<2x2xf32, #tpu.memory_space<vmem>>) attributes {dimension_semantics = [], scalar_prefetch = 0 : i64, scratch_operands = 0 : i64, tpu.core_type = #tpu.core_type<tc>} {
    %0 = tpu.iota {dimensions = array<i32: 1>} : vector<16x50xi32>
    %c0 = arith.constant 0 : index
    %c0_0 = arith.constant 0 : index
    %1 = vector.load %arg0[%c0, %c0_0] : memref<16x1xi32, #tpu.memory_space<vmem>>, vector<16x1xi32>
    %2 = vector.broadcast %1 : vector<16x1xi32> to vector<16x50xi32>
    %3 = arith.cmpi eq, %2, %0 : vector<16x50xi32>
    %4 = arith.extui %3 : vector<16x50xi1> to vector<16x50xi32>
    %5 = arith.sitofp %4 : vector<16x50xi32> to vector<16x50xf32>
    %c0_1 = arith.constant 0 : index
    %c0_2 = arith.constant 0 : index
    %6 = vector.load %arg4[%c0_1, %c0_2] : memref<50x32xf32, #tpu.memory_space<vmem>>, vector<50x32xf32>
    %cst = arith.constant dense<0.000000e+00> : vector<16x32xf32>
    %7 = tpu.matmul %5, %6, %cst {dimension_numbers = #tpu.dot_dimension_numbers<[1], [0], [0], [1], [0, 0, 1, 1], [], []>} : vector<16x50xf32>, vector<50x32xf32>, vector<16x32xf32> -> vector<16x32xf32>
    %c0_3 = arith.constant 0 : index
    %c0_4 = arith.constant 0 : index
    %8 = vector.load %arg5[%c0_3, %c0_4] : memref<16x32xf32, #tpu.memory_space<vmem>>, vector<8x32xf32>
    %9 = tpu.concatenate %8, %8 in 0 : vector<8x32xf32>, vector<8x32xf32> -> vector<16x32xf32>
    %c0_5 = arith.constant 0 : index
    %c0_6 = arith.constant 0 : index
    %10 = vector.load %arg1[%c0_5, %c0_6] : memref<16x1xi32, #tpu.memory_space<vmem>>, vector<16x1xi32>
    %11 = arith.sitofp %10 : vector<16x1xi32> to vector<16x1xf32>
    %c0_7 = arith.constant 0 : index
    %c0_8 = arith.constant 0 : index
    %12 = vector.load %arg6[%c0_7, %c0_8] : memref<2x32xf32, #tpu.memory_space<vmem>>, vector<1x32xf32>
    %c1 = arith.constant 1 : index
    %c0_9 = arith.constant 0 : index
    %13 = vector.load %arg6[%c1, %c0_9] : memref<2x32xf32, #tpu.memory_space<vmem>>, vector<1x32xf32>
    %c0_10 = arith.constant 0 : index
    %c0_11 = arith.constant 0 : index
    %14 = vector.load %arg6[%c0_10, %c0_11] : memref<2x32xf32, #tpu.memory_space<vmem>>, vector<1x32xf32>
    %15 = arith.subf %13, %14 : vector<1x32xf32>
    %16 = vector.broadcast %11 : vector<16x1xf32> to vector<16x32xf32>
    %17 = vector.broadcast %15 : vector<1x32xf32> to vector<16x32xf32>
    %18 = arith.mulf %16, %17 : vector<16x32xf32>
    %19 = vector.broadcast %12 : vector<1x32xf32> to vector<16x32xf32>
    %20 = arith.addf %19, %18 : vector<16x32xf32>
    %21 = arith.addf %7, %9 : vector<16x32xf32>
    %22 = arith.addf %21, %20 : vector<16x32xf32>
    %c0_12 = arith.constant 0 : index
    %c0_13 = arith.constant 0 : index
    %23 = vector.load %arg7[%c0_12, %c0_13] : memref<1x32xf32, #tpu.memory_space<vmem>>, vector<1x32xf32>
    %c0_14 = arith.constant 0 : index
    %c0_15 = arith.constant 0 : index
    %24 = vector.load %arg8[%c0_14, %c0_15] : memref<1x32xf32, #tpu.memory_space<vmem>>, vector<1x32xf32>
    %cst_16 = arith.constant dense<0.000000e+00> : vector<16xf32>
    %25 = vector.multi_reduction <add>, %22, %cst_16 [1] : vector<16x32xf32> to vector<16xf32>
    %26 = vector.shape_cast %25 : vector<16xf32> to vector<16x1xf32>
    %cst_17 = arith.constant 3.200000e+01 : f32
    %27 = vector.broadcast %cst_17 : f32 to vector<16x1xf32>
    %28 = arith.divf %26, %27 : vector<16x1xf32>
    %29 = vector.broadcast %28 : vector<16x1xf32> to vector<16x32xf32>
    %30 = arith.subf %22, %29 : vector<16x32xf32>
    %31 = arith.mulf %30, %30 : vector<16x32xf32>
    %cst_18 = arith.constant dense<0.000000e+00> : vector<16xf32>
    %32 = vector.multi_reduction <add>, %31, %cst_18 [1] : vector<16x32xf32> to vector<16xf32>
    %33 = vector.shape_cast %32 : vector<16xf32> to vector<16x1xf32>
    %cst_19 = arith.constant 3.200000e+01 : f32
    %34 = vector.broadcast %cst_19 : f32 to vector<16x1xf32>
    %35 = arith.divf %33, %34 : vector<16x1xf32>
    %cst_20 = arith.constant 9.99999996E-13 : f32
    %36 = vector.broadcast %cst_20 : f32 to vector<16x1xf32>
    %37 = arith.addf %35, %36 : vector<16x1xf32>
    %38 = math.rsqrt %37 : vector<16x1xf32>
    %39 = vector.broadcast %38 : vector<16x1xf32> to vector<16x32xf32>
    %40 = arith.mulf %30, %39 : vector<16x32xf32>
    %41 = vector.broadcast %23 : vector<1x32xf32> to vector<16x32xf32>
    %42 = arith.mulf %40, %41 : vector<16x32xf32>
    %43 = vector.broadcast %24 : vector<1x32xf32> to vector<16x32xf32>
    %44 = arith.addf %42, %43 : vector<16x32xf32>
    %c0_21 = arith.constant 0 : index
    %c0_22 = arith.constant 0 : index
    %45 = vector.load %arg2[%c0_21, %c0_22] : memref<2x8xf32, #tpu.memory_space<vmem>>, vector<2x8xf32>
    %cst_23 = arith.constant 1.000000e+00 : f32
    %46 = vector.broadcast %cst_23 : f32 to vector<2x8xf32>
    %47 = arith.subf %46, %45 : vector<2x8xf32>
    %cst_24 = arith.constant -1.000000e+04 : f32
    %48 = vector.broadcast %cst_24 : f32 to vector<2x8xf32>
    %49 = arith.mulf %47, %48 : vector<2x8xf32>
    %c0_25 = arith.constant 0 : index
    %c0_26 = arith.constant 0 : index
    %50 = vector.load %arg9[%c0_25, %c0_26] : memref<32x96xf32, #tpu.memory_space<vmem>>, vector<32x96xf32>
    %cst_27 = arith.constant dense<0.000000e+00> : vector<16x96xf32>
    %51 = tpu.matmul %44, %50, %cst_27 {dimension_numbers = #tpu.dot_dimension_numbers<[1], [0], [0], [1], [0, 0, 1, 1], [], []>} : vector<16x32xf32>, vector<32x96xf32>, vector<16x96xf32> -> vector<16x96xf32>
    %c0_28 = arith.constant 0 : index
    %c0_29 = arith.constant 0 : index
    %52 = vector.load %arg10[%c0_28, %c0_29] : memref<1x96xf32, #tpu.memory_space<vmem>>, vector<1x96xf32>
    %53 = vector.broadcast %52 : vector<1x96xf32> to vector<16x96xf32>
    %54 = arith.addf %51, %53 : vector<16x96xf32>
    %55 = vector.extract_strided_slice %54 {offsets = [0, 0], sizes = [16, 32], strides = [1, 1]} : vector<16x96xf32> to vector<16x32xf32>
    %56 = vector.extract_strided_slice %54 {offsets = [0, 32], sizes = [16, 32], strides = [1, 1]} : vector<16x96xf32> to vector<16x32xf32>
    %57 = vector.extract_strided_slice %54 {offsets = [0, 64], sizes = [16, 32], strides = [1, 1]} : vector<16x96xf32> to vector<16x32xf32>
    %58 = vector.extract_strided_slice %49 {offsets = [0, 0], sizes = [1, 8], strides = [1, 1]} : vector<2x8xf32> to vector<1x8xf32>
    %59 = vector.extract_strided_slice %55 {offsets = [0, 0], sizes = [8, 16], strides = [1, 1]} : vector<16x32xf32> to vector<8x16xf32>
    %60 = vector.extract_strided_slice %56 {offsets = [0, 0], sizes = [8, 16], strides = [1, 1]} : vector<16x32xf32> to vector<8x16xf32>
    %61 = vector.extract_strided_slice %57 {offsets = [0, 0], sizes = [8, 16], strides = [1, 1]} : vector<16x32xf32> to vector<8x16xf32>
    "tpu.trace_start"() <{level = 10 : i32, message = "qd,kd->qk"}> : () -> ()
    %cst_30 = arith.constant dense<0.000000e+00> : vector<8x8xf32>
    %62 = tpu.matmul %59, %60, %cst_30 {dimension_numbers = #tpu.dot_dimension_numbers<[1], [1], [0], [0], [0, 0, 1, 0], [], []>} : vector<8x16xf32>, vector<8x16xf32>, vector<8x8xf32> -> vector<8x8xf32>
    "tpu.trace_stop"() : () -> ()
    %cst_31 = arith.constant 2.500000e-01 : f32
    %63 = vector.broadcast %cst_31 : f32 to vector<8x8xf32>
    %64 = arith.mulf %62, %63 : vector<8x8xf32>
    %65 = vector.broadcast %58 : vector<1x8xf32> to vector<8x8xf32>
    %66 = arith.addf %64, %65 : vector<8x8xf32>
    %cst_32 = arith.constant dense<0xFF800000> : vector<8xf32>
    %67 = vector.multi_reduction <maximumf>, %66, %cst_32 [1] : vector<8x8xf32> to vector<8xf32>
    %68 = vector.shape_cast %67 : vector<8xf32> to vector<8x1xf32>
    %69 = vector.broadcast %68 : vector<8x1xf32> to vector<8x8xf32>
    %70 = arith.subf %66, %69 : vector<8x8xf32>
    %71 = math.exp %70 : vector<8x8xf32>
    %cst_33 = arith.constant dense<0.000000e+00> : vector<8xf32>
    %72 = vector.multi_reduction <add>, %71, %cst_33 [1] : vector<8x8xf32> to vector<8xf32>
    %73 = vector.shape_cast %72 : vector<8xf32> to vector<8x1xf32>
    %74 = tpu.reciprocal %73 {approx = true} : vector<8x1xf32> -> vector<8x1xf32>
    %75 = vector.broadcast %74 : vector<8x1xf32> to vector<8x8xf32>
    %76 = arith.mulf %71, %75 : vector<8x8xf32>
    %cst_34 = arith.constant dense<0.000000e+00> : vector<8x16xf32>
    %77 = tpu.matmul %76, %61, %cst_34 {dimension_numbers = #tpu.dot_dimension_numbers<[1], [0], [0], [1], [0, 0, 1, 1], [], []>} : vector<8x8xf32>, vector<8x16xf32>, vector<8x16xf32> -> vector<8x16xf32>
    %78 = vector.extract_strided_slice %55 {offsets = [0, 16], sizes = [8, 16], strides = [1, 1]} : vector<16x32xf32> to vector<8x16xf32>
    %79 = vector.extract_strided_slice %56 {offsets = [0, 16], sizes = [8, 16], strides = [1, 1]} : vector<16x32xf32> to vector<8x16xf32>
    %80 = vector.extract_strided_slice %57 {offsets = [0, 16], sizes = [8, 16], strides = [1, 1]} : vector<16x32xf32> to vector<8x16xf32>
    "tpu.trace_start"() <{level = 10 : i32, message = "qd,kd->qk"}> : () -> ()
    %cst_35 = arith.constant dense<0.000000e+00> : vector<8x8xf32>
    %81 = tpu.matmul %78, %79, %cst_35 {dimension_numbers = #tpu.dot_dimension_numbers<[1], [1], [0], [0], [0, 0, 1, 0], [], []>} : vector<8x16xf32>, vector<8x16xf32>, vector<8x8xf32> -> vector<8x8xf32>
    "tpu.trace_stop"() : () -> ()
    %cst_36 = arith.constant 2.500000e-01 : f32
    %82 = vector.broadcast %cst_36 : f32 to vector<8x8xf32>
    %83 = arith.mulf %81, %82 : vector<8x8xf32>
    %84 = vector.broadcast %58 : vector<1x8xf32> to vector<8x8xf32>
    %85 = arith.addf %83, %84 : vector<8x8xf32>
    %cst_37 = arith.constant dense<0xFF800000> : vector<8xf32>
    %86 = vector.multi_reduction <maximumf>, %85, %cst_37 [1] : vector<8x8xf32> to vector<8xf32>
    %87 = vector.shape_cast %86 : vector<8xf32> to vector<8x1xf32>
    %88 = vector.broadcast %87 : vector<8x1xf32> to vector<8x8xf32>
    %89 = arith.subf %85, %88 : vector<8x8xf32>
    %90 = math.exp %89 : vector<8x8xf32>
    %cst_38 = arith.constant dense<0.000000e+00> : vector<8xf32>
    %91 = vector.multi_reduction <add>, %90, %cst_38 [1] : vector<8x8xf32> to vector<8xf32>
    %92 = vector.shape_cast %91 : vector<8xf32> to vector<8x1xf32>
    %93 = tpu.reciprocal %92 {approx = true} : vector<8x1xf32> -> vector<8x1xf32>
    %94 = vector.broadcast %93 : vector<8x1xf32> to vector<8x8xf32>
    %95 = arith.mulf %90, %94 : vector<8x8xf32>
    %cst_39 = arith.constant dense<0.000000e+00> : vector<8x16xf32>
    %96 = tpu.matmul %95, %80, %cst_39 {dimension_numbers = #tpu.dot_dimension_numbers<[1], [0], [0], [1], [0, 0, 1, 1], [], []>} : vector<8x8xf32>, vector<8x16xf32>, vector<8x16xf32> -> vector<8x16xf32>
    %97 = tpu.concatenate %77, %96 in 1 : vector<8x16xf32>, vector<8x16xf32> -> vector<8x32xf32>
    %98 = vector.extract_strided_slice %49 {offsets = [1, 0], sizes = [1, 8], strides = [1, 1]} : vector<2x8xf32> to vector<1x8xf32>
    %99 = vector.extract_strided_slice %55 {offsets = [8, 0], sizes = [8, 16], strides = [1, 1]} : vector<16x32xf32> to vector<8x16xf32>
    %100 = vector.extract_strided_slice %56 {offsets = [8, 0], sizes = [8, 16], strides = [1, 1]} : vector<16x32xf32> to vector<8x16xf32>
    %101 = vector.extract_strided_slice %57 {offsets = [8, 0], sizes = [8, 16], strides = [1, 1]} : vector<16x32xf32> to vector<8x16xf32>
    "tpu.trace_start"() <{level = 10 : i32, message = "qd,kd->qk"}> : () -> ()
    %cst_40 = arith.constant dense<0.000000e+00> : vector<8x8xf32>
    %102 = tpu.matmul %99, %100, %cst_40 {dimension_numbers = #tpu.dot_dimension_numbers<[1], [1], [0], [0], [0, 0, 1, 0], [], []>} : vector<8x16xf32>, vector<8x16xf32>, vector<8x8xf32> -> vector<8x8xf32>
    "tpu.trace_stop"() : () -> ()
    %cst_41 = arith.constant 2.500000e-01 : f32
    %103 = vector.broadcast %cst_41 : f32 to vector<8x8xf32>
    %104 = arith.mulf %102, %103 : vector<8x8xf32>
    %105 = vector.broadcast %98 : vector<1x8xf32> to vector<8x8xf32>
    %106 = arith.addf %104, %105 : vector<8x8xf32>
    %cst_42 = arith.constant dense<0xFF800000> : vector<8xf32>
    %107 = vector.multi_reduction <maximumf>, %106, %cst_42 [1] : vector<8x8xf32> to vector<8xf32>
    %108 = vector.shape_cast %107 : vector<8xf32> to vector<8x1xf32>
    %109 = vector.broadcast %108 : vector<8x1xf32> to vector<8x8xf32>
    %110 = arith.subf %106, %109 : vector<8x8xf32>
    %111 = math.exp %110 : vector<8x8xf32>
    %cst_43 = arith.constant dense<0.000000e+00> : vector<8xf32>
    %112 = vector.multi_reduction <add>, %111, %cst_43 [1] : vector<8x8xf32> to vector<8xf32>
    %113 = vector.shape_cast %112 : vector<8xf32> to vector<8x1xf32>
    %114 = tpu.reciprocal %113 {approx = true} : vector<8x1xf32> -> vector<8x1xf32>
    %115 = vector.broadcast %114 : vector<8x1xf32> to vector<8x8xf32>
    %116 = arith.mulf %111, %115 : vector<8x8xf32>
    %cst_44 = arith.constant dense<0.000000e+00> : vector<8x16xf32>
    %117 = tpu.matmul %116, %101, %cst_44 {dimension_numbers = #tpu.dot_dimension_numbers<[1], [0], [0], [1], [0, 0, 1, 1], [], []>} : vector<8x8xf32>, vector<8x16xf32>, vector<8x16xf32> -> vector<8x16xf32>
    %118 = vector.extract_strided_slice %55 {offsets = [8, 16], sizes = [8, 16], strides = [1, 1]} : vector<16x32xf32> to vector<8x16xf32>
    %119 = vector.extract_strided_slice %56 {offsets = [8, 16], sizes = [8, 16], strides = [1, 1]} : vector<16x32xf32> to vector<8x16xf32>
    %120 = vector.extract_strided_slice %57 {offsets = [8, 16], sizes = [8, 16], strides = [1, 1]} : vector<16x32xf32> to vector<8x16xf32>
    "tpu.trace_start"() <{level = 10 : i32, message = "qd,kd->qk"}> : () -> ()
    %cst_45 = arith.constant dense<0.000000e+00> : vector<8x8xf32>
    %121 = tpu.matmul %118, %119, %cst_45 {dimension_numbers = #tpu.dot_dimension_numbers<[1], [1], [0], [0], [0, 0, 1, 0], [], []>} : vector<8x16xf32>, vector<8x16xf32>, vector<8x8xf32> -> vector<8x8xf32>
    "tpu.trace_stop"() : () -> ()
    %cst_46 = arith.constant 2.500000e-01 : f32
    %122 = vector.broadcast %cst_46 : f32 to vector<8x8xf32>
    %123 = arith.mulf %121, %122 : vector<8x8xf32>
    %124 = vector.broadcast %98 : vector<1x8xf32> to vector<8x8xf32>
    %125 = arith.addf %123, %124 : vector<8x8xf32>
    %cst_47 = arith.constant dense<0xFF800000> : vector<8xf32>
    %126 = vector.multi_reduction <maximumf>, %125, %cst_47 [1] : vector<8x8xf32> to vector<8xf32>
    %127 = vector.shape_cast %126 : vector<8xf32> to vector<8x1xf32>
    %128 = vector.broadcast %127 : vector<8x1xf32> to vector<8x8xf32>
    %129 = arith.subf %125, %128 : vector<8x8xf32>
    %130 = math.exp %129 : vector<8x8xf32>
    %cst_48 = arith.constant dense<0.000000e+00> : vector<8xf32>
    %131 = vector.multi_reduction <add>, %130, %cst_48 [1] : vector<8x8xf32> to vector<8xf32>
    %132 = vector.shape_cast %131 : vector<8xf32> to vector<8x1xf32>
    %133 = tpu.reciprocal %132 {approx = true} : vector<8x1xf32> -> vector<8x1xf32>
    %134 = vector.broadcast %133 : vector<8x1xf32> to vector<8x8xf32>
    %135 = arith.mulf %130, %134 : vector<8x8xf32>
    %cst_49 = arith.constant dense<0.000000e+00> : vector<8x16xf32>
    %136 = tpu.matmul %135, %120, %cst_49 {dimension_numbers = #tpu.dot_dimension_numbers<[1], [0], [0], [1], [0, 0, 1, 1], [], []>} : vector<8x8xf32>, vector<8x16xf32>, vector<8x16xf32> -> vector<8x16xf32>
    %137 = tpu.concatenate %117, %136 in 1 : vector<8x16xf32>, vector<8x16xf32> -> vector<8x32xf32>
    %138 = tpu.concatenate %97, %137 in 0 : vector<8x32xf32>, vector<8x32xf32> -> vector<16x32xf32>
    %c0_50 = arith.constant 0 : index
    %c0_51 = arith.constant 0 : index
    %139 = vector.load %arg11[%c0_50, %c0_51] : memref<32x32xf32, #tpu.memory_space<vmem>>, vector<32x32xf32>
    %cst_52 = arith.constant dense<0.000000e+00> : vector<16x32xf32>
    %140 = tpu.matmul %138, %139, %cst_52 {dimension_numbers = #tpu.dot_dimension_numbers<[1], [0], [0], [1], [0, 0, 1, 1], [], []>} : vector<16x32xf32>, vector<32x32xf32>, vector<16x32xf32> -> vector<16x32xf32>
    %c0_53 = arith.constant 0 : index
    %c0_54 = arith.constant 0 : index
    %141 = vector.load %arg12[%c0_53, %c0_54] : memref<1x32xf32, #tpu.memory_space<vmem>>, vector<1x32xf32>
    %142 = vector.broadcast %141 : vector<1x32xf32> to vector<16x32xf32>
    %143 = arith.addf %140, %142 : vector<16x32xf32>
    %144 = arith.addf %143, %44 : vector<16x32xf32>
    %c0_55 = arith.constant 0 : index
    %c0_56 = arith.constant 0 : index
    %145 = vector.load %arg13[%c0_55, %c0_56] : memref<1x32xf32, #tpu.memory_space<vmem>>, vector<1x32xf32>
    %c0_57 = arith.constant 0 : index
    %c0_58 = arith.constant 0 : index
    %146 = vector.load %arg14[%c0_57, %c0_58] : memref<1x32xf32, #tpu.memory_space<vmem>>, vector<1x32xf32>
    %cst_59 = arith.constant dense<0.000000e+00> : vector<16xf32>
    %147 = vector.multi_reduction <add>, %144, %cst_59 [1] : vector<16x32xf32> to vector<16xf32>
    %148 = vector.shape_cast %147 : vector<16xf32> to vector<16x1xf32>
    %cst_60 = arith.constant 3.200000e+01 : f32
    %149 = vector.broadcast %cst_60 : f32 to vector<16x1xf32>
    %150 = arith.divf %148, %149 : vector<16x1xf32>
    %151 = vector.broadcast %150 : vector<16x1xf32> to vector<16x32xf32>
    %152 = arith.subf %144, %151 : vector<16x32xf32>
    %153 = arith.mulf %152, %152 : vector<16x32xf32>
    %cst_61 = arith.constant dense<0.000000e+00> : vector<16xf32>
    %154 = vector.multi_reduction <add>, %153, %cst_61 [1] : vector<16x32xf32> to vector<16xf32>
    %155 = vector.shape_cast %154 : vector<16xf32> to vector<16x1xf32>
    %cst_62 = arith.constant 3.200000e+01 : f32
    %156 = vector.broadcast %cst_62 : f32 to vector<16x1xf32>
    %157 = arith.divf %155, %156 : vector<16x1xf32>
    %cst_63 = arith.constant 9.99999996E-13 : f32
    %158 = vector.broadcast %cst_63 : f32 to vector<16x1xf32>
    %159 = arith.addf %157, %158 : vector<16x1xf32>
    %160 = math.rsqrt %159 : vector<16x1xf32>
    %161 = vector.broadcast %160 : vector<16x1xf32> to vector<16x32xf32>
    %162 = arith.mulf %152, %161 : vector<16x32xf32>
    %163 = vector.broadcast %145 : vector<1x32xf32> to vector<16x32xf32>
    %164 = arith.mulf %162, %163 : vector<16x32xf32>
    %165 = vector.broadcast %146 : vector<1x32xf32> to vector<16x32xf32>
    %166 = arith.addf %164, %165 : vector<16x32xf32>
    %c0_64 = arith.constant 0 : index
    %c0_65 = arith.constant 0 : index
    %167 = vector.load %arg15[%c0_64, %c0_65] : memref<32x64xf32, #tpu.memory_space<vmem>>, vector<32x64xf32>
    %cst_66 = arith.constant dense<0.000000e+00> : vector<16x64xf32>
    %168 = tpu.matmul %166, %167, %cst_66 {dimension_numbers = #tpu.dot_dimension_numbers<[1], [0], [0], [1], [0, 0, 1, 1], [], []>} : vector<16x32xf32>, vector<32x64xf32>, vector<16x64xf32> -> vector<16x64xf32>
    %c0_67 = arith.constant 0 : index
    %c0_68 = arith.constant 0 : index
    %169 = vector.load %arg16[%c0_67, %c0_68] : memref<1x64xf32, #tpu.memory_space<vmem>>, vector<1x64xf32>
    %170 = vector.broadcast %169 : vector<1x64xf32> to vector<16x64xf32>
    %171 = arith.addf %168, %170 : vector<16x64xf32>
    %cst_69 = arith.constant 5.000000e-01 : f32
    %172 = vector.broadcast %cst_69 : f32 to vector<16x64xf32>
    %173 = arith.mulf %172, %171 : vector<16x64xf32>
    %cst_70 = arith.constant 4.471500e-02 : f32
    %174 = vector.broadcast %cst_70 : f32 to vector<16x64xf32>
    %175 = arith.mulf %174, %171 : vector<16x64xf32>
    %176 = arith.mulf %175, %171 : vector<16x64xf32>
    %177 = arith.mulf %176, %171 : vector<16x64xf32>
    %178 = arith.addf %171, %177 : vector<16x64xf32>
    %cst_71 = arith.constant 0.797884583 : f32
    %179 = vector.broadcast %cst_71 : f32 to vector<16x64xf32>
    %180 = arith.mulf %179, %178 : vector<16x64xf32>
    %181 = math.tanh %180 : vector<16x64xf32>
    %cst_72 = arith.constant 1.000000e+00 : f32
    %182 = vector.broadcast %cst_72 : f32 to vector<16x64xf32>
    %183 = arith.addf %182, %181 : vector<16x64xf32>
    %184 = arith.mulf %173, %183 : vector<16x64xf32>
    %c0_73 = arith.constant 0 : index
    %c0_74 = arith.constant 0 : index
    %185 = vector.load %arg17[%c0_73, %c0_74] : memref<64x32xf32, #tpu.memory_space<vmem>>, vector<64x32xf32>
    %cst_75 = arith.constant dense<0.000000e+00> : vector<16x32xf32>
    %186 = tpu.matmul %184, %185, %cst_75 {dimension_numbers = #tpu.dot_dimension_numbers<[1], [0], [0], [1], [0, 0, 1, 1], [], []>} : vector<16x64xf32>, vector<64x32xf32>, vector<16x32xf32> -> vector<16x32xf32>
    %c0_76 = arith.constant 0 : index
    %c0_77 = arith.constant 0 : index
    %187 = vector.load %arg18[%c0_76, %c0_77] : memref<1x32xf32, #tpu.memory_space<vmem>>, vector<1x32xf32>
    %188 = vector.broadcast %187 : vector<1x32xf32> to vector<16x32xf32>
    %189 = arith.addf %186, %188 : vector<16x32xf32>
    %190 = arith.addf %189, %166 : vector<16x32xf32>
    %c0_78 = arith.constant 0 : index
    %c0_79 = arith.constant 0 : index
    %191 = vector.load %arg19[%c0_78, %c0_79] : memref<1x32xf32, #tpu.memory_space<vmem>>, vector<1x32xf32>
    %c0_80 = arith.constant 0 : index
    %c0_81 = arith.constant 0 : index
    %192 = vector.load %arg20[%c0_80, %c0_81] : memref<1x32xf32, #tpu.memory_space<vmem>>, vector<1x32xf32>
    %cst_82 = arith.constant dense<0.000000e+00> : vector<16xf32>
    %193 = vector.multi_reduction <add>, %190, %cst_82 [1] : vector<16x32xf32> to vector<16xf32>
    %194 = vector.shape_cast %193 : vector<16xf32> to vector<16x1xf32>
    %cst_83 = arith.constant 3.200000e+01 : f32
    %195 = vector.broadcast %cst_83 : f32 to vector<16x1xf32>
    %196 = arith.divf %194, %195 : vector<16x1xf32>
    %197 = vector.broadcast %196 : vector<16x1xf32> to vector<16x32xf32>
    %198 = arith.subf %190, %197 : vector<16x32xf32>
    %199 = arith.mulf %198, %198 : vector<16x32xf32>
    %cst_84 = arith.constant dense<0.000000e+00> : vector<16xf32>
    %200 = vector.multi_reduction <add>, %199, %cst_84 [1] : vector<16x32xf32> to vector<16xf32>
    %201 = vector.shape_cast %200 : vector<16xf32> to vector<16x1xf32>
    %cst_85 = arith.constant 3.200000e+01 : f32
    %202 = vector.broadcast %cst_85 : f32 to vector<16x1xf32>
    %203 = arith.divf %201, %202 : vector<16x1xf32>
    %cst_86 = arith.constant 9.99999996E-13 : f32
    %204 = vector.broadcast %cst_86 : f32 to vector<16x1xf32>
    %205 = arith.addf %203, %204 : vector<16x1xf32>
    %206 = math.rsqrt %205 : vector<16x1xf32>
    %207 = vector.broadcast %206 : vector<16x1xf32> to vector<16x32xf32>
    %208 = arith.mulf %198, %207 : vector<16x32xf32>
    %209 = vector.broadcast %191 : vector<1x32xf32> to vector<16x32xf32>
    %210 = arith.mulf %208, %209 : vector<16x32xf32>
    %211 = vector.broadcast %192 : vector<1x32xf32> to vector<16x32xf32>
    %212 = arith.addf %210, %211 : vector<16x32xf32>
    %c0_87 = arith.constant 0 : index
    %c0_88 = arith.constant 0 : index
    %213 = vector.load %arg21[%c0_87, %c0_88] : memref<32x96xf32, #tpu.memory_space<vmem>>, vector<32x96xf32>
    %cst_89 = arith.constant dense<0.000000e+00> : vector<16x96xf32>
    %214 = tpu.matmul %212, %213, %cst_89 {dimension_numbers = #tpu.dot_dimension_numbers<[1], [0], [0], [1], [0, 0, 1, 1], [], []>} : vector<16x32xf32>, vector<32x96xf32>, vector<16x96xf32> -> vector<16x96xf32>
    %c0_90 = arith.constant 0 : index
    %c0_91 = arith.constant 0 : index
    %215 = vector.load %arg22[%c0_90, %c0_91] : memref<1x96xf32, #tpu.memory_space<vmem>>, vector<1x96xf32>
    %216 = vector.broadcast %215 : vector<1x96xf32> to vector<16x96xf32>
    %217 = arith.addf %214, %216 : vector<16x96xf32>
    %218 = vector.extract_strided_slice %217 {offsets = [0, 0], sizes = [16, 32], strides = [1, 1]} : vector<16x96xf32> to vector<16x32xf32>
    %219 = vector.extract_strided_slice %217 {offsets = [0, 32], sizes = [16, 32], strides = [1, 1]} : vector<16x96xf32> to vector<16x32xf32>
    %220 = vector.extract_strided_slice %217 {offsets = [0, 64], sizes = [16, 32], strides = [1, 1]} : vector<16x96xf32> to vector<16x32xf32>
    %221 = vector.extract_strided_slice %49 {offsets = [0, 0], sizes = [1, 8], strides = [1, 1]} : vector<2x8xf32> to vector<1x8xf32>
    %222 = vector.extract_strided_slice %218 {offsets = [0, 0], sizes = [8, 16], strides = [1, 1]} : vector<16x32xf32> to vector<8x16xf32>
    %223 = vector.extract_strided_slice %219 {offsets = [0, 0], sizes = [8, 16], strides = [1, 1]} : vector<16x32xf32> to vector<8x16xf32>
    %224 = vector.extract_strided_slice %220 {offsets = [0, 0], sizes = [8, 16], strides = [1, 1]} : vector<16x32xf32> to vector<8x16xf32>
    "tpu.trace_start"() <{level = 10 : i32, message = "qd,kd->qk"}> : () -> ()
    %cst_92 = arith.constant dense<0.000000e+00> : vector<8x8xf32>
    %225 = tpu.matmul %222, %223, %cst_92 {dimension_numbers = #tpu.dot_dimension_numbers<[1], [1], [0], [0], [0, 0, 1, 0], [], []>} : vector<8x16xf32>, vector<8x16xf32>, vector<8x8xf32> -> vector<8x8xf32>
    "tpu.trace_stop"() : () -> ()
    %cst_93 = arith.constant 2.500000e-01 : f32
    %226 = vector.broadcast %cst_93 : f32 to vector<8x8xf32>
    %227 = arith.mulf %225, %226 : vector<8x8xf32>
    %228 = vector.broadcast %221 : vector<1x8xf32> to vector<8x8xf32>
    %229 = arith.addf %227, %228 : vector<8x8xf32>
    %cst_94 = arith.constant dense<0xFF800000> : vector<8xf32>
    %230 = vector.multi_reduction <maximumf>, %229, %cst_94 [1] : vector<8x8xf32> to vector<8xf32>
    %231 = vector.shape_cast %230 : vector<8xf32> to vector<8x1xf32>
    %232 = vector.broadcast %231 : vector<8x1xf32> to vector<8x8xf32>
    %233 = arith.subf %229, %232 : vector<8x8xf32>
    %234 = math.exp %233 : vector<8x8xf32>
    %cst_95 = arith.constant dense<0.000000e+00> : vector<8xf32>
    %235 = vector.multi_reduction <add>, %234, %cst_95 [1] : vector<8x8xf32> to vector<8xf32>
    %236 = vector.shape_cast %235 : vector<8xf32> to vector<8x1xf32>
    %237 = tpu.reciprocal %236 {approx = true} : vector<8x1xf32> -> vector<8x1xf32>
    %238 = vector.broadcast %237 : vector<8x1xf32> to vector<8x8xf32>
    %239 = arith.mulf %234, %238 : vector<8x8xf32>
    %cst_96 = arith.constant dense<0.000000e+00> : vector<8x16xf32>
    %240 = tpu.matmul %239, %224, %cst_96 {dimension_numbers = #tpu.dot_dimension_numbers<[1], [0], [0], [1], [0, 0, 1, 1], [], []>} : vector<8x8xf32>, vector<8x16xf32>, vector<8x16xf32> -> vector<8x16xf32>
    %241 = vector.extract_strided_slice %218 {offsets = [0, 16], sizes = [8, 16], strides = [1, 1]} : vector<16x32xf32> to vector<8x16xf32>
    %242 = vector.extract_strided_slice %219 {offsets = [0, 16], sizes = [8, 16], strides = [1, 1]} : vector<16x32xf32> to vector<8x16xf32>
    %243 = vector.extract_strided_slice %220 {offsets = [0, 16], sizes = [8, 16], strides = [1, 1]} : vector<16x32xf32> to vector<8x16xf32>
    "tpu.trace_start"() <{level = 10 : i32, message = "qd,kd->qk"}> : () -> ()
    %cst_97 = arith.constant dense<0.000000e+00> : vector<8x8xf32>
    %244 = tpu.matmul %241, %242, %cst_97 {dimension_numbers = #tpu.dot_dimension_numbers<[1], [1], [0], [0], [0, 0, 1, 0], [], []>} : vector<8x16xf32>, vector<8x16xf32>, vector<8x8xf32> -> vector<8x8xf32>
    "tpu.trace_stop"() : () -> ()
    %cst_98 = arith.constant 2.500000e-01 : f32
    %245 = vector.broadcast %cst_98 : f32 to vector<8x8xf32>
    %246 = arith.mulf %244, %245 : vector<8x8xf32>
    %247 = vector.broadcast %221 : vector<1x8xf32> to vector<8x8xf32>
    %248 = arith.addf %246, %247 : vector<8x8xf32>
    %cst_99 = arith.constant dense<0xFF800000> : vector<8xf32>
    %249 = vector.multi_reduction <maximumf>, %248, %cst_99 [1] : vector<8x8xf32> to vector<8xf32>
    %250 = vector.shape_cast %249 : vector<8xf32> to vector<8x1xf32>
    %251 = vector.broadcast %250 : vector<8x1xf32> to vector<8x8xf32>
    %252 = arith.subf %248, %251 : vector<8x8xf32>
    %253 = math.exp %252 : vector<8x8xf32>
    %cst_100 = arith.constant dense<0.000000e+00> : vector<8xf32>
    %254 = vector.multi_reduction <add>, %253, %cst_100 [1] : vector<8x8xf32> to vector<8xf32>
    %255 = vector.shape_cast %254 : vector<8xf32> to vector<8x1xf32>
    %256 = tpu.reciprocal %255 {approx = true} : vector<8x1xf32> -> vector<8x1xf32>
    %257 = vector.broadcast %256 : vector<8x1xf32> to vector<8x8xf32>
    %258 = arith.mulf %253, %257 : vector<8x8xf32>
    %cst_101 = arith.constant dense<0.000000e+00> : vector<8x16xf32>
    %259 = tpu.matmul %258, %243, %cst_101 {dimension_numbers = #tpu.dot_dimension_numbers<[1], [0], [0], [1], [0, 0, 1, 1], [], []>} : vector<8x8xf32>, vector<8x16xf32>, vector<8x16xf32> -> vector<8x16xf32>
    %260 = tpu.concatenate %240, %259 in 1 : vector<8x16xf32>, vector<8x16xf32> -> vector<8x32xf32>
    %261 = vector.extract_strided_slice %49 {offsets = [1, 0], sizes = [1, 8], strides = [1, 1]} : vector<2x8xf32> to vector<1x8xf32>
    %262 = vector.extract_strided_slice %218 {offsets = [8, 0], sizes = [8, 16], strides = [1, 1]} : vector<16x32xf32> to vector<8x16xf32>
    %263 = vector.extract_strided_slice %219 {offsets = [8, 0], sizes = [8, 16], strides = [1, 1]} : vector<16x32xf32> to vector<8x16xf32>
    %264 = vector.extract_strided_slice %220 {offsets = [8, 0], sizes = [8, 16], strides = [1, 1]} : vector<16x32xf32> to vector<8x16xf32>
    "tpu.trace_start"() <{level = 10 : i32, message = "qd,kd->qk"}> : () -> ()
    %cst_102 = arith.constant dense<0.000000e+00> : vector<8x8xf32>
    %265 = tpu.matmul %262, %263, %cst_102 {dimension_numbers = #tpu.dot_dimension_numbers<[1], [1], [0], [0], [0, 0, 1, 0], [], []>} : vector<8x16xf32>, vector<8x16xf32>, vector<8x8xf32> -> vector<8x8xf32>
    "tpu.trace_stop"() : () -> ()
    %cst_103 = arith.constant 2.500000e-01 : f32
    %266 = vector.broadcast %cst_103 : f32 to vector<8x8xf32>
    %267 = arith.mulf %265, %266 : vector<8x8xf32>
    %268 = vector.broadcast %261 : vector<1x8xf32> to vector<8x8xf32>
    %269 = arith.addf %267, %268 : vector<8x8xf32>
    %cst_104 = arith.constant dense<0xFF800000> : vector<8xf32>
    %270 = vector.multi_reduction <maximumf>, %269, %cst_104 [1] : vector<8x8xf32> to vector<8xf32>
    %271 = vector.shape_cast %270 : vector<8xf32> to vector<8x1xf32>
    %272 = vector.broadcast %271 : vector<8x1xf32> to vector<8x8xf32>
    %273 = arith.subf %269, %272 : vector<8x8xf32>
    %274 = math.exp %273 : vector<8x8xf32>
    %cst_105 = arith.constant dense<0.000000e+00> : vector<8xf32>
    %275 = vector.multi_reduction <add>, %274, %cst_105 [1] : vector<8x8xf32> to vector<8xf32>
    %276 = vector.shape_cast %275 : vector<8xf32> to vector<8x1xf32>
    %277 = tpu.reciprocal %276 {approx = true} : vector<8x1xf32> -> vector<8x1xf32>
    %278 = vector.broadcast %277 : vector<8x1xf32> to vector<8x8xf32>
    %279 = arith.mulf %274, %278 : vector<8x8xf32>
    %cst_106 = arith.constant dense<0.000000e+00> : vector<8x16xf32>
    %280 = tpu.matmul %279, %264, %cst_106 {dimension_numbers = #tpu.dot_dimension_numbers<[1], [0], [0], [1], [0, 0, 1, 1], [], []>} : vector<8x8xf32>, vector<8x16xf32>, vector<8x16xf32> -> vector<8x16xf32>
    %281 = vector.extract_strided_slice %218 {offsets = [8, 16], sizes = [8, 16], strides = [1, 1]} : vector<16x32xf32> to vector<8x16xf32>
    %282 = vector.extract_strided_slice %219 {offsets = [8, 16], sizes = [8, 16], strides = [1, 1]} : vector<16x32xf32> to vector<8x16xf32>
    %283 = vector.extract_strided_slice %220 {offsets = [8, 16], sizes = [8, 16], strides = [1, 1]} : vector<16x32xf32> to vector<8x16xf32>
    "tpu.trace_start"() <{level = 10 : i32, message = "qd,kd->qk"}> : () -> ()
    %cst_107 = arith.constant dense<0.000000e+00> : vector<8x8xf32>
    %284 = tpu.matmul %281, %282, %cst_107 {dimension_numbers = #tpu.dot_dimension_numbers<[1], [1], [0], [0], [0, 0, 1, 0], [], []>} : vector<8x16xf32>, vector<8x16xf32>, vector<8x8xf32> -> vector<8x8xf32>
    "tpu.trace_stop"() : () -> ()
    %cst_108 = arith.constant 2.500000e-01 : f32
    %285 = vector.broadcast %cst_108 : f32 to vector<8x8xf32>
    %286 = arith.mulf %284, %285 : vector<8x8xf32>
    %287 = vector.broadcast %261 : vector<1x8xf32> to vector<8x8xf32>
    %288 = arith.addf %286, %287 : vector<8x8xf32>
    %cst_109 = arith.constant dense<0xFF800000> : vector<8xf32>
    %289 = vector.multi_reduction <maximumf>, %288, %cst_109 [1] : vector<8x8xf32> to vector<8xf32>
    %290 = vector.shape_cast %289 : vector<8xf32> to vector<8x1xf32>
    %291 = vector.broadcast %290 : vector<8x1xf32> to vector<8x8xf32>
    %292 = arith.subf %288, %291 : vector<8x8xf32>
    %293 = math.exp %292 : vector<8x8xf32>
    %cst_110 = arith.constant dense<0.000000e+00> : vector<8xf32>
    %294 = vector.multi_reduction <add>, %293, %cst_110 [1] : vector<8x8xf32> to vector<8xf32>
    %295 = vector.shape_cast %294 : vector<8xf32> to vector<8x1xf32>
    %296 = tpu.reciprocal %295 {approx = true} : vector<8x1xf32> -> vector<8x1xf32>
    %297 = vector.broadcast %296 : vector<8x1xf32> to vector<8x8xf32>
    %298 = arith.mulf %293, %297 : vector<8x8xf32>
    %cst_111 = arith.constant dense<0.000000e+00> : vector<8x16xf32>
    %299 = tpu.matmul %298, %283, %cst_111 {dimension_numbers = #tpu.dot_dimension_numbers<[1], [0], [0], [1], [0, 0, 1, 1], [], []>} : vector<8x8xf32>, vector<8x16xf32>, vector<8x16xf32> -> vector<8x16xf32>
    %300 = tpu.concatenate %280, %299 in 1 : vector<8x16xf32>, vector<8x16xf32> -> vector<8x32xf32>
    %301 = tpu.concatenate %260, %300 in 0 : vector<8x32xf32>, vector<8x32xf32> -> vector<16x32xf32>
    %c0_112 = arith.constant 0 : index
    %c0_113 = arith.constant 0 : index
    %302 = vector.load %arg23[%c0_112, %c0_113] : memref<32x32xf32, #tpu.memory_space<vmem>>, vector<32x32xf32>
    %cst_114 = arith.constant dense<0.000000e+00> : vector<16x32xf32>
    %303 = tpu.matmul %301, %302, %cst_114 {dimension_numbers = #tpu.dot_dimension_numbers<[1], [0], [0], [1], [0, 0, 1, 1], [], []>} : vector<16x32xf32>, vector<32x32xf32>, vector<16x32xf32> -> vector<16x32xf32>
    %c0_115 = arith.constant 0 : index
    %c0_116 = arith.constant 0 : index
    %304 = vector.load %arg24[%c0_115, %c0_116] : memref<1x32xf32, #tpu.memory_space<vmem>>, vector<1x32xf32>
    %305 = vector.broadcast %304 : vector<1x32xf32> to vector<16x32xf32>
    %306 = arith.addf %303, %305 : vector<16x32xf32>
    %307 = arith.addf %306, %212 : vector<16x32xf32>
    %c0_117 = arith.constant 0 : index
    %c0_118 = arith.constant 0 : index
    %308 = vector.load %arg25[%c0_117, %c0_118] : memref<1x32xf32, #tpu.memory_space<vmem>>, vector<1x32xf32>
    %c0_119 = arith.constant 0 : index
    %c0_120 = arith.constant 0 : index
    %309 = vector.load %arg26[%c0_119, %c0_120] : memref<1x32xf32, #tpu.memory_space<vmem>>, vector<1x32xf32>
    %cst_121 = arith.constant dense<0.000000e+00> : vector<16xf32>
    %310 = vector.multi_reduction <add>, %307, %cst_121 [1] : vector<16x32xf32> to vector<16xf32>
    %311 = vector.shape_cast %310 : vector<16xf32> to vector<16x1xf32>
    %cst_122 = arith.constant 3.200000e+01 : f32
    %312 = vector.broadcast %cst_122 : f32 to vector<16x1xf32>
    %313 = arith.divf %311, %312 : vector<16x1xf32>
    %314 = vector.broadcast %313 : vector<16x1xf32> to vector<16x32xf32>
    %315 = arith.subf %307, %314 : vector<16x32xf32>
    %316 = arith.mulf %315, %315 : vector<16x32xf32>
    %cst_123 = arith.constant dense<0.000000e+00> : vector<16xf32>
    %317 = vector.multi_reduction <add>, %316, %cst_123 [1] : vector<16x32xf32> to vector<16xf32>
    %318 = vector.shape_cast %317 : vector<16xf32> to vector<16x1xf32>
    %cst_124 = arith.constant 3.200000e+01 : f32
    %319 = vector.broadcast %cst_124 : f32 to vector<16x1xf32>
    %320 = arith.divf %318, %319 : vector<16x1xf32>
    %cst_125 = arith.constant 9.99999996E-13 : f32
    %321 = vector.broadcast %cst_125 : f32 to vector<16x1xf32>
    %322 = arith.addf %320, %321 : vector<16x1xf32>
    %323 = math.rsqrt %322 : vector<16x1xf32>
    %324 = vector.broadcast %323 : vector<16x1xf32> to vector<16x32xf32>
    %325 = arith.mulf %315, %324 : vector<16x32xf32>
    %326 = vector.broadcast %308 : vector<1x32xf32> to vector<16x32xf32>
    %327 = arith.mulf %325, %326 : vector<16x32xf32>
    %328 = vector.broadcast %309 : vector<1x32xf32> to vector<16x32xf32>
    %329 = arith.addf %327, %328 : vector<16x32xf32>
    %c0_126 = arith.constant 0 : index
    %c0_127 = arith.constant 0 : index
    %330 = vector.load %arg27[%c0_126, %c0_127] : memref<32x64xf32, #tpu.memory_space<vmem>>, vector<32x64xf32>
    %cst_128 = arith.constant dense<0.000000e+00> : vector<16x64xf32>
    %331 = tpu.matmul %329, %330, %cst_128 {dimension_numbers = #tpu.dot_dimension_numbers<[1], [0], [0], [1], [0, 0, 1, 1], [], []>} : vector<16x32xf32>, vector<32x64xf32>, vector<16x64xf32> -> vector<16x64xf32>
    %c0_129 = arith.constant 0 : index
    %c0_130 = arith.constant 0 : index
    %332 = vector.load %arg28[%c0_129, %c0_130] : memref<1x64xf32, #tpu.memory_space<vmem>>, vector<1x64xf32>
    %333 = vector.broadcast %332 : vector<1x64xf32> to vector<16x64xf32>
    %334 = arith.addf %331, %333 : vector<16x64xf32>
    %cst_131 = arith.constant 5.000000e-01 : f32
    %335 = vector.broadcast %cst_131 : f32 to vector<16x64xf32>
    %336 = arith.mulf %335, %334 : vector<16x64xf32>
    %cst_132 = arith.constant 4.471500e-02 : f32
    %337 = vector.broadcast %cst_132 : f32 to vector<16x64xf32>
    %338 = arith.mulf %337, %334 : vector<16x64xf32>
    %339 = arith.mulf %338, %334 : vector<16x64xf32>
    %340 = arith.mulf %339, %334 : vector<16x64xf32>
    %341 = arith.addf %334, %340 : vector<16x64xf32>
    %cst_133 = arith.constant 0.797884583 : f32
    %342 = vector.broadcast %cst_133 : f32 to vector<16x64xf32>
    %343 = arith.mulf %342, %341 : vector<16x64xf32>
    %344 = math.tanh %343 : vector<16x64xf32>
    %cst_134 = arith.constant 1.000000e+00 : f32
    %345 = vector.broadcast %cst_134 : f32 to vector<16x64xf32>
    %346 = arith.addf %345, %344 : vector<16x64xf32>
    %347 = arith.mulf %336, %346 : vector<16x64xf32>
    %c0_135 = arith.constant 0 : index
    %c0_136 = arith.constant 0 : index
    %348 = vector.load %arg29[%c0_135, %c0_136] : memref<64x32xf32, #tpu.memory_space<vmem>>, vector<64x32xf32>
    %cst_137 = arith.constant dense<0.000000e+00> : vector<16x32xf32>
    %349 = tpu.matmul %347, %348, %cst_137 {dimension_numbers = #tpu.dot_dimension_numbers<[1], [0], [0], [1], [0, 0, 1, 1], [], []>} : vector<16x64xf32>, vector<64x32xf32>, vector<16x32xf32> -> vector<16x32xf32>
    %c0_138 = arith.constant 0 : index
    %c0_139 = arith.constant 0 : index
    %350 = vector.load %arg30[%c0_138, %c0_139] : memref<1x32xf32, #tpu.memory_space<vmem>>, vector<1x32xf32>
    %351 = vector.broadcast %350 : vector<1x32xf32> to vector<16x32xf32>
    %352 = arith.addf %349, %351 : vector<16x32xf32>
    %353 = arith.addf %352, %329 : vector<16x32xf32>
    %c0_140 = arith.constant 0 : index
    %c0_141 = arith.constant 0 : index
    %354 = vector.load %arg31[%c0_140, %c0_141] : memref<1x32xf32, #tpu.memory_space<vmem>>, vector<1x32xf32>
    %c0_142 = arith.constant 0 : index
    %c0_143 = arith.constant 0 : index
    %355 = vector.load %arg32[%c0_142, %c0_143] : memref<1x32xf32, #tpu.memory_space<vmem>>, vector<1x32xf32>
    %cst_144 = arith.constant dense<0.000000e+00> : vector<16xf32>
    %356 = vector.multi_reduction <add>, %353, %cst_144 [1] : vector<16x32xf32> to vector<16xf32>
    %357 = vector.shape_cast %356 : vector<16xf32> to vector<16x1xf32>
    %cst_145 = arith.constant 3.200000e+01 : f32
    %358 = vector.broadcast %cst_145 : f32 to vector<16x1xf32>
    %359 = arith.divf %357, %358 : vector<16x1xf32>
    %360 = vector.broadcast %359 : vector<16x1xf32> to vector<16x32xf32>
    %361 = arith.subf %353, %360 : vector<16x32xf32>
    %362 = arith.mulf %361, %361 : vector<16x32xf32>
    %cst_146 = arith.constant dense<0.000000e+00> : vector<16xf32>
    %363 = vector.multi_reduction <add>, %362, %cst_146 [1] : vector<16x32xf32> to vector<16xf32>
    %364 = vector.shape_cast %363 : vector<16xf32> to vector<16x1xf32>
    %cst_147 = arith.constant 3.200000e+01 : f32
    %365 = vector.broadcast %cst_147 : f32 to vector<16x1xf32>
    %366 = arith.divf %364, %365 : vector<16x1xf32>
    %cst_148 = arith.constant 9.99999996E-13 : f32
    %367 = vector.broadcast %cst_148 : f32 to vector<16x1xf32>
    %368 = arith.addf %366, %367 : vector<16x1xf32>
    %369 = math.rsqrt %368 : vector<16x1xf32>
    %370 = vector.broadcast %369 : vector<16x1xf32> to vector<16x32xf32>
    %371 = arith.mulf %361, %370 : vector<16x32xf32>
    %372 = vector.broadcast %354 : vector<1x32xf32> to vector<16x32xf32>
    %373 = arith.mulf %371, %372 : vector<16x32xf32>
    %374 = vector.broadcast %355 : vector<1x32xf32> to vector<16x32xf32>
    %375 = arith.addf %373, %374 : vector<16x32xf32>
    %376 = vector.extract_strided_slice %375 {offsets = [0, 0], sizes = [1, 32], strides = [1, 1]} : vector<16x32xf32> to vector<1x32xf32>
    %377 = vector.extract_strided_slice %375 {offsets = [8, 0], sizes = [1, 32], strides = [1, 1]} : vector<16x32xf32> to vector<1x32xf32>
    %378 = tpu.concatenate %376, %377 in 0 : vector<1x32xf32>, vector<1x32xf32> -> vector<2x32xf32>
    %c0_149 = arith.constant 0 : index
    %c0_150 = arith.constant 0 : index
    %379 = vector.load %arg33[%c0_149, %c0_150] : memref<32x32xf32, #tpu.memory_space<vmem>>, vector<32x32xf32>
    %cst_151 = arith.constant dense<0.000000e+00> : vector<2x32xf32>
    %380 = tpu.matmul %378, %379, %cst_151 {dimension_numbers = #tpu.dot_dimension_numbers<[1], [0], [0], [1], [0, 0, 1, 1], [], []>} : vector<2x32xf32>, vector<32x32xf32>, vector<2x32xf32> -> vector<2x32xf32>
    %c0_152 = arith.constant 0 : index
    %c0_153 = arith.constant 0 : index
    %381 = vector.load %arg34[%c0_152, %c0_153] : memref<1x32xf32, #tpu.memory_space<vmem>>, vector<1x32xf32>
    %382 = vector.broadcast %381 : vector<1x32xf32> to vector<2x32xf32>
    %383 = arith.addf %380, %382 : vector<2x32xf32>
    %384 = math.tanh %383 : vector<2x32xf32>
    %c0_154 = arith.constant 0 : index
    %c0_155 = arith.constant 0 : index
    %385 = vector.load %arg35[%c0_154, %c0_155] : memref<32x2xf32, #tpu.memory_space<vmem>>, vector<32x2xf32>
    %cst_156 = arith.constant dense<0.000000e+00> : vector<2x2xf32>
    %386 = tpu.matmul %384, %385, %cst_156 {dimension_numbers = #tpu.dot_dimension_numbers<[1], [0], [0], [1], [0, 0, 1, 1], [], []>} : vector<2x32xf32>, vector<32x2xf32>, vector<2x2xf32> -> vector<2x2xf32>
    %c0_157 = arith.constant 0 : index
    %c0_158 = arith.constant 0 : index
    %387 = vector.load %arg36[%c0_157, %c0_158] : memref<1x2xf32, #tpu.memory_space<vmem>>, vector<1x2xf32>
    %388 = vector.broadcast %387 : vector<1x2xf32> to vector<2x2xf32>
    %389 = arith.addf %386, %388 : vector<2x2xf32>
    %390 = tpu.iota {dimensions = array<i32: 1>} : vector<2x2xi32>
    %c0_159 = arith.constant 0 : index
    %c0_160 = arith.constant 0 : index
    %391 = vector.load %arg3[%c0_159, %c0_160] : memref<2x1xi32, #tpu.memory_space<vmem>>, vector<2x1xi32>
    %392 = vector.broadcast %391 : vector<2x1xi32> to vector<2x2xi32>
    %393 = arith.cmpi eq, %392, %390 : vector<2x2xi32>
    %394 = arith.extui %393 : vector<2x2xi1> to vector<2x2xi32>
    %395 = arith.sitofp %394 : vector<2x2xi32> to vector<2x2xf32>
    %cst_161 = arith.constant dense<0xFF800000> : vector<2xf32>
    %396 = vector.multi_reduction <maximumf>, %389, %cst_161 [1] : vector<2x2xf32> to vector<2xf32>
    %397 = vector.shape_cast %396 : vector<2xf32> to vector<2x1xf32>
    %398 = vector.broadcast %397 : vector<2x1xf32> to vector<2x2xf32>
    %399 = arith.subf %389, %398 : vector<2x2xf32>
    %400 = math.exp %399 : vector<2x2xf32>
    %cst_162 = arith.constant dense<0.000000e+00> : vector<2xf32>
    %401 = vector.multi_reduction <add>, %400, %cst_162 [1] : vector<2x2xf32> to vector<2xf32>
    %402 = vector.shape_cast %401 : vector<2xf32> to vector<2x1xf32>
    %403 = tpu.reciprocal %402 {approx = true} : vector<2x1xf32> -> vector<2x1xf32>
    %404 = vector.broadcast %403 : vector<2x1xf32> to vector<2x2xf32>
    %405 = arith.mulf %400, %404 : vector<2x2xf32>
    %406 = vector.broadcast %397 : vector<2x1xf32> to vector<2x2xf32>
    %407 = arith.subf %389, %406 : vector<2x2xf32>
    %408 = math.log %402 : vector<2x1xf32>
    %409 = vector.broadcast %408 : vector<2x1xf32> to vector<2x2xf32>
    %410 = arith.subf %407, %409 : vector<2x2xf32>
    %411 = arith.mulf %395, %410 : vector<2x2xf32>
    %cst_163 = arith.constant dense<0.000000e+00> : vector<2xf32>
    %412 = vector.multi_reduction <add>, %411, %cst_163 [1] : vector<2x2xf32> to vector<2xf32>
    %413 = vector.shape_cast %412 : vector<2xf32> to vector<2x1xf32>
    %cst_164 = arith.constant 0.000000e+00 : f32
    %414 = vector.broadcast %cst_164 : f32 to vector<2x1xf32>
    %415 = arith.subf %414, %413 : vector<2x1xf32>
    %c0_165 = arith.constant 0 : index
    %c0_166 = arith.constant 0 : index
    %416 = vector.load %arg38[%c0_165, %c0_166] : memref<2x2xf32, #tpu.memory_space<vmem>>, vector<2x2xf32>
    tpu.vector_store %arg38[%c0_165, %c0_166], %389 {strides = array<i32>} : memref<2x2xf32, #tpu.memory_space<vmem>>, vector<2x2xf32>,
    %c0_167 = arith.constant 0 : index
    %c0_168 = arith.constant 0 : index
    %417 = vector.load %arg39[%c0_167, %c0_168] : memref<2x2xf32, #tpu.memory_space<vmem>>, vector<2x2xf32>
    tpu.vector_store %arg39[%c0_167, %c0_168], %405 {strides = array<i32>} : memref<2x2xf32, #tpu.memory_space<vmem>>, vector<2x2xf32>,
    %cst_169 = arith.constant dense<0.000000e+00> : vector<1xf32>
    %418 = vector.multi_reduction <add>, %415, %cst_169 [0] : vector<2x1xf32> to vector<1xf32>
    %419 = vector.shape_cast %418 : vector<1xf32> to vector<1x1xf32>
    %cst_170 = arith.constant 5.000000e-01 : f32
    %420 = vector.broadcast %cst_170 : f32 to vector<1x1xf32>
    %421 = arith.mulf %419, %420 : vector<1x1xf32>
    %c0_171 = arith.constant 0 : index
    %c0_172 = arith.constant 0 : index
    %422 = vector.load %arg37[%c0_171, %c0_172] : memref<1x1xf32, #tpu.memory_space<vmem>>, vector<1x1xf32>
    tpu.vector_store %arg37[%c0_171, %c0_172], %421 {strides = array<i32>} : memref<1x1xf32, #tpu.memory_space<vmem>>, vector<1x1xf32>,
    return
  }
}

</mosaic_0001>

<llo_original>
// kernel: bert_forward.1
$region0: #{bert_forward.1}
  #allocation0 [shape = 'u32[]', space=smem, size = 0x4, offset = 0x4, fixed_abs, tag = 'smem constant byte address 0x4 - core index']
  #allocation1 [shape = 'u32[72,128]{1,0:T(1,128)}', space=vmem, size = 0x9000, scoped, tag = 'internal scratch']
  %s0 = inlined_call_operand.smem [shape: u32[40], index: -1, kind: input, shape index: {}]
  %s1 = sld [smem:[%s0]]
  %s2 = scalar_lea.smem %s0, 1
  %s3 = sld [smem:[%s2]]
  %s4 = scalar_lea.smem %s0, 2
  %s5 = sld [smem:[%s4]]
  %s6 = scalar_lea.smem %s0, 3
  %s7 = sld [smem:[%s6]]
  %s8 = scalar_lea.smem %s0, 4
  %s9 = sld [smem:[%s8]]
  %s10 = scalar_lea.smem %s0, 5
  %s11 = sld [smem:[%s10]]
  %s12 = scalar_lea.smem %s0, 6
  %s13 = sld [smem:[%s12]]
  %s14 = scalar_lea.smem %s0, 7
  %s15 = sld [smem:[%s14]]
  %s16 = scalar_lea.smem %s0, 8
  %s17 = sld [smem:[%s16]]
  %s18 = scalar_lea.smem %s0, 9
  %s19 = sld [smem:[%s18]]
  %s20 = scalar_lea.smem %s0, 10
  %s21 = sld [smem:[%s20]]
  %s22 = scalar_lea.smem %s0, 11
  %s23 = sld [smem:[%s22]]
  %s24 = scalar_lea.smem %s0, 12
  %s25 = sld [smem:[%s24]]
  %s26 = scalar_lea.smem %s0, 13
  %s27 = sld [smem:[%s26]]
  %s28 = scalar_lea.smem %s0, 14
  %s29 = sld [smem:[%s28]]
  %s30 = scalar_lea.smem %s0, 15
  %s31 = sld [smem:[%s30]]
  %s32 = scalar_lea.smem %s0, 16
  %s33 = sld [smem:[%s32]]
  %s34 = scalar_lea.smem %s0, 17
  %s35 = sld [smem:[%s34]]
  %s36 = scalar_lea.smem %s0, 18
  %s37 = sld [smem:[%s36]]
  %s38 = scalar_lea.smem %s0, 19
  %s39 = sld [smem:[%s38]]
  %s40 = scalar_lea.smem %s0, 20
  %s41 = sld [smem:[%s40]]
  %s42 = scalar_lea.smem %s0, 21
  %s43 = sld [smem:[%s42]]
  %s44 = scalar_lea.smem %s0, 22
  %s45 = sld [smem:[%s44]]
  %s46 = scalar_lea.smem %s0, 23
  %s47 = sld [smem:[%s46]]
  %s48 = scalar_lea.smem %s0, 24
  %s49 = sld [smem:[%s48]]
  %s50 = scalar_lea.smem %s0, 25
  %s51 = sld [smem:[%s50]]
  %s52 = scalar_lea.smem %s0, 26
  %s53 = sld [smem:[%s52]]
  %s54 = scalar_lea.smem %s0, 27
  %s55 = sld [smem:[%s54]]
  %s56 = scalar_lea.smem %s0, 28
  %s57 = sld [smem:[%s56]]
  %s58 = scalar_lea.smem %s0, 29
  %s59 = sld [smem:[%s58]]
  %s60 = scalar_lea.smem %s0, 30
  %s61 = sld [smem:[%s60]]
  %s62 = scalar_lea.smem %s0, 31
  %s63 = sld [smem:[%s62]]
  %s64 = scalar_lea.smem %s0, 32
  %s65 = sld [smem:[%s64]]
  %s66 = scalar_lea.smem %s0, 33
  %s67 = sld [smem:[%s66]]
  %s68 = scalar_lea.smem %s0, 34
  %s69 = sld [smem:[%s68]]
  %s70 = scalar_lea.smem %s0, 35
  %s71 = sld [smem:[%s70]]
  %s72 = scalar_lea.smem %s0, 36
  %s73 = sld [smem:[%s72]]
  %s74 = scalar_lea.smem %s0, 37
  %s75 = sld [smem:[%s74]]
  %s76 = scalar_lea.smem %s0, 38
  %s77 = sld [smem:[%s76]]
  %s78 = scalar_lea.smem %s0, 39
  %s79 = sld [smem:[%s78]]
  %80 = xla_tuple %s75, %s77, %s79
  %s81 = sld [smem:[#allocation0]]
  $region174: #{bert_forward.1} parent=0
    _
  %s83 = ssub.s32 1, %s81
  %s84 = scalar_select 0, %s83, %s81
  $region1: #{bert_forward.1} parent=0
    #allocation2 [shape = 'u8[512]{0}', space=vmem, size = 0x400, scoped, tag = 'output window, operand 0, single buffered']
    #allocation3 [shape = 's32[1]{0}', space=sflag, size = 0x4, scoped, tag = 'scoped memory for bert_forward.1']
    #allocation4 [shape = 'u8[1024]{0}', space=vmem, size = 0x400, scoped, tag = 'output window, operand 1, single buffered']
    #allocation5 [shape = 's32[1]{0}', space=sflag, size = 0x4, scoped, tag = 'scoped memory for bert_forward.1']
    #allocation6 [shape = 'u8[1024]{0}', space=vmem, size = 0x400, scoped, tag = 'output window, operand 2, single buffered']
    %85 = vsyncpa [#allocation3], 0
    %86 = vsyncpa [#allocation5], 0
    // Predicated region
    $region2: #{bert_forward.1} parent=1 // pred_check
      _
    $region3: #{bert_forward.1} parent=1 // pred_check_branch
      %88 = sbr.rel (0) target = $region5
    $region4: #{bert_forward.1} parent=1 // pred_region
      _
    $region5: #{bert_forward.1} parent=1 // pred_fallthru
      _
    // Predicated region
    $region6: #{bert_forward.1} parent=1 // pred_check
      _
    $region7: #{bert_forward.1} parent=1 // pred_check_branch
      %90 = sbr.rel (0) target = $region9
    $region8: #{bert_forward.1} parent=1 // pred_region
      _
    $region9: #{bert_forward.1} parent=1 // pred_fallthru
      _
    // Predicated region
    $region10: #{bert_forward.1} parent=1 // pred_check
      _
    $region11: #{bert_forward.1} parent=1 // pred_check_branch
      %92 = sbr.rel (0) target = $region13
    $region12: #{bert_forward.1} parent=1 // pred_region
      _
    $region13: #{bert_forward.1} parent=1 // pred_fallthru
      _
    // Predicated region
    $region14: #{bert_forward.1} parent=1 // pred_check
      _
    $region15: #{bert_forward.1} parent=1 // pred_check_branch
      %94 = sbr.rel (0) target = $region17
    $region16: #{bert_forward.1} parent=1 // pred_region
      _
    $region17: #{bert_forward.1} parent=1 // pred_fallthru
      _
    // Predicated region
    $region18: #{bert_forward.1} parent=1 // pred_check
      _
    $region19: #{bert_forward.1} parent=1 // pred_check_branch
      %96 = sbr.rel (0) target = $region21
    $region20: #{bert_forward.1} parent=1 // pred_region
      _
    $region21: #{bert_forward.1} parent=1 // pred_fallthru
      _
    // Predicated region
    $region22: #{bert_forward.1} parent=1 // pred_check
      _
    $region23: #{bert_forward.1} parent=1 // pred_check_branch
      %98 = sbr.rel (0) target = $region25
    $region24: #{bert_forward.1} parent=1 // pred_region
      _
    $region25: #{bert_forward.1} parent=1 // pred_fallthru
      _
    // Predicated region
    $region26: #{bert_forward.1} parent=1 // pred_check
      _
    $region27: #{bert_forward.1} parent=1 // pred_check_branch
      %100 = sbr.rel (0) target = $region29
    $region28: #{bert_forward.1} parent=1 // pred_region
      _
    $region29: #{bert_forward.1} parent=1 // pred_fallthru
      _
    // Predicated region
    $region30: #{bert_forward.1} parent=1 // pred_check
      _
    $region31: #{bert_forward.1} parent=1 // pred_check_branch
      %102 = sbr.rel (0) target = $region33
    $region32: #{bert_forward.1} parent=1 // pred_region
      _
    $region33: #{bert_forward.1} parent=1 // pred_fallthru
      _
    // Predicated region
    $region34: #{bert_forward.1} parent=1 // pred_check
      _
    $region35: #{bert_forward.1} parent=1 // pred_check_branch
      %104 = sbr.rel (0) target = $region37
    $region36: #{bert_forward.1} parent=1 // pred_region
      _
    $region37: #{bert_forward.1} parent=1 // pred_fallthru
      _
    // Predicated region
    $region38: #{bert_forward.1} parent=1 // pred_check
      _
    $region39: #{bert_forward.1} parent=1 // pred_check_branch
      %106 = sbr.rel (0) target = $region41
    $region40: #{bert_forward.1} parent=1 // pred_region
      _
    $region41: #{bert_forward.1} parent=1 // pred_fallthru
      _
    // Predicated region
    $region42: #{bert_forward.1} parent=1 // pred_check
      _
    $region43: #{bert_forward.1} parent=1 // pred_check_branch
      %108 = sbr.rel (0) target = $region45
    $region44: #{bert_forward.1} parent=1 // pred_region
      _
    $region45: #{bert_forward.1} parent=1 // pred_fallthru
      _
    // Predicated region
    $region46: #{bert_forward.1} parent=1 // pred_check
      _
    $region47: #{bert_forward.1} parent=1 // pred_check_branch
      %110 = sbr.rel (0) target = $region49
    $region48: #{bert_forward.1} parent=1 // pred_region
      _
    $region49: #{bert_forward.1} parent=1 // pred_fallthru
      _
    // Predicated region
    $region50: #{bert_forward.1} parent=1 // pred_check
      _
    $region51: #{bert_forward.1} parent=1 // pred_check_branch
      %112 = sbr.rel (0) target = $region53
    $region52: #{bert_forward.1} parent=1 // pred_region
      _
    $region53: #{bert_forward.1} parent=1 // pred_fallthru
      _
    // Predicated region
    $region54: #{bert_forward.1} parent=1 // pred_check
      _
    $region55: #{bert_forward.1} parent=1 // pred_check_branch
      %114 = sbr.rel (0) target = $region57
    $region56: #{bert_forward.1} parent=1 // pred_region
      _
    $region57: #{bert_forward.1} parent=1 // pred_fallthru
      _
    // Predicated region
    $region58: #{bert_forward.1} parent=1 // pred_check
      _
    $region59: #{bert_forward.1} parent=1 // pred_check_branch
      %116 = sbr.rel (0) target = $region61
    $region60: #{bert_forward.1} parent=1 // pred_region
      _
    $region61: #{bert_forward.1} parent=1 // pred_fallthru
      _
    // Predicated region
    $region62: #{bert_forward.1} parent=1 // pred_check
      _
    $region63: #{bert_forward.1} parent=1 // pred_check_branch
      %118 = sbr.rel (0) target = $region65
    $region64: #{bert_forward.1} parent=1 // pred_region
      _
    $region65: #{bert_forward.1} parent=1 // pred_fallthru
      _
    // Predicated region
    $region66: #{bert_forward.1} parent=1 // pred_check
      _
    $region67: #{bert_forward.1} parent=1 // pred_check_branch
      %120 = sbr.rel (0) target = $region69
    $region68: #{bert_forward.1} parent=1 // pred_region
      _
    $region69: #{bert_forward.1} parent=1 // pred_fallthru
      _
    // Predicated region
    $region70: #{bert_forward.1} parent=1 // pred_check
      _
    $region71: #{bert_forward.1} parent=1 // pred_check_branch
      %122 = sbr.rel (0) target = $region73
    $region72: #{bert_forward.1} parent=1 // pred_region
      _
    $region73: #{bert_forward.1} parent=1 // pred_fallthru
      _
    // Predicated region
    $region74: #{bert_forward.1} parent=1 // pred_check
      _
    $region75: #{bert_forward.1} parent=1 // pred_check_branch
      %124 = sbr.rel (0) target = $region77
    $region76: #{bert_forward.1} parent=1 // pred_region
      _
    $region77: #{bert_forward.1} parent=1 // pred_fallthru
      _
    // Predicated region
    $region78: #{bert_forward.1} parent=1 // pred_check
      _
    $region79: #{bert_forward.1} parent=1 // pred_check_branch
      %126 = sbr.rel (0) target = $region81
    $region80: #{bert_forward.1} parent=1 // pred_region
      _
    $region81: #{bert_forward.1} parent=1 // pred_fallthru
      _
    // Predicated region
    $region82: #{bert_forward.1} parent=1 // pred_check
      _
    $region83: #{bert_forward.1} parent=1 // pred_check_branch
      %128 = sbr.rel (0) target = $region85
    $region84: #{bert_forward.1} parent=1 // pred_region
      _
    $region85: #{bert_forward.1} parent=1 // pred_fallthru
      _
    // Predicated region
    $region86: #{bert_forward.1} parent=1 // pred_check
      _
    $region87: #{bert_forward.1} parent=1 // pred_check_branch
      %130 = sbr.rel (0) target = $region89
    $region88: #{bert_forward.1} parent=1 // pred_region
      _
    $region89: #{bert_forward.1} parent=1 // pred_fallthru
      _
    // Predicated region
    $region90: #{bert_forward.1} parent=1 // pred_check
      _
    $region91: #{bert_forward.1} parent=1 // pred_check_branch
      %132 = sbr.rel (0) target = $region93
    $region92: #{bert_forward.1} parent=1 // pred_region
      _
    $region93: #{bert_forward.1} parent=1 // pred_fallthru
      _
    // Predicated region
    $region94: #{bert_forward.1} parent=1 // pred_check
      _
    $region95: #{bert_forward.1} parent=1 // pred_check_branch
      %134 = sbr.rel (0) target = $region97
    $region96: #{bert_forward.1} parent=1 // pred_region
      _
    $region97: #{bert_forward.1} parent=1 // pred_fallthru
      _
    // Predicated region
    $region98: #{bert_forward.1} parent=1 // pred_check
      _
    $region99: #{bert_forward.1} parent=1 // pred_check_branch
      %136 = sbr.rel (0) target = $region101
    $region100: #{bert_forward.1} parent=1 // pred_region
      _
    $region101: #{bert_forward.1} parent=1 // pred_fallthru
      _
    // Predicated region
    $region102: #{bert_forward.1} parent=1 // pred_check
      _
    $region103: #{bert_forward.1} parent=1 // pred_check_branch
      %138 = sbr.rel (0) target = $region105
    $region104: #{bert_forward.1} parent=1 // pred_region
      _
    $region105: #{bert_forward.1} parent=1 // pred_fallthru
      _
    // Predicated region
    $region106: #{bert_forward.1} parent=1 // pred_check
      _
    $region107: #{bert_forward.1} parent=1 // pred_check_branch
      %140 = sbr.rel (0) target = $region109
    $region108: #{bert_forward.1} parent=1 // pred_region
      _
    $region109: #{bert_forward.1} parent=1 // pred_fallthru
      _
    // Predicated region
    $region110: #{bert_forward.1} parent=1 // pred_check
      _
    $region111: #{bert_forward.1} parent=1 // pred_check_branch
      %142 = sbr.rel (0) target = $region113
    $region112: #{bert_forward.1} parent=1 // pred_region
      _
    $region113: #{bert_forward.1} parent=1 // pred_fallthru
      _
    // Predicated region
    $region114: #{bert_forward.1} parent=1 // pred_check
      _
    $region115: #{bert_forward.1} parent=1 // pred_check_branch
      %144 = sbr.rel (0) target = $region117
    $region116: #{bert_forward.1} parent=1 // pred_region
      _
    $region117: #{bert_forward.1} parent=1 // pred_fallthru
      _
    // Predicated region
    $region118: #{bert_forward.1} parent=1 // pred_check
      _
    $region119: #{bert_forward.1} parent=1 // pred_check_branch
      %146 = sbr.rel (0) target = $region121
    $region120: #{bert_forward.1} parent=1 // pred_region
      _
    $region121: #{bert_forward.1} parent=1 // pred_fallthru
      _
    // Predicated region
    $region122: #{bert_forward.1} parent=1 // pred_check
      _
    $region123: #{bert_forward.1} parent=1 // pred_check_branch
      %148 = sbr.rel (0) target = $region125
    $region124: #{bert_forward.1} parent=1 // pred_region
      _
    $region125: #{bert_forward.1} parent=1 // pred_fallthru
      _
    // Predicated region
    $region126: #{bert_forward.1} parent=1 // pred_check
      _
    $region127: #{bert_forward.1} parent=1 // pred_check_branch
      %150 = sbr.rel (0) target = $region129
    $region128: #{bert_forward.1} parent=1 // pred_region
      _
    $region129: #{bert_forward.1} parent=1 // pred_fallthru
      _
    // Predicated region
    $region130: #{bert_forward.1} parent=1 // pred_check
      _
    $region131: #{bert_forward.1} parent=1 // pred_check_branch
      %152 = sbr.rel (0) target = $region133
    $region132: #{bert_forward.1} parent=1 // pred_region
      _
    $region133: #{bert_forward.1} parent=1 // pred_fallthru
      _
    // Predicated region
    $region134: #{bert_forward.1} parent=1 // pred_check
      _
    $region135: #{bert_forward.1} parent=1 // pred_check_branch
      %154 = sbr.rel (0) target = $region137
    $region136: #{bert_forward.1} parent=1 // pred_region
      _
    $region137: #{bert_forward.1} parent=1 // pred_fallthru
      _
    // Predicated region
    $region138: #{bert_forward.1} parent=1 // pred_check
      _
    $region139: #{bert_forward.1} parent=1 // pred_check_branch
      %156 = sbr.rel (0) target = $region141
    $region140: #{bert_forward.1} parent=1 // pred_region
      _
    $region141: #{bert_forward.1} parent=1 // pred_fallthru
      _
    // Predicated region
    $region142: #{bert_forward.1} parent=1 // pred_check
      _
    $region143: #{bert_forward.1} parent=1 // pred_check_branch
      %158 = sbr.rel (0) target = $region145
    $region144: #{bert_forward.1} parent=1 // pred_region
      _
    $region145: #{bert_forward.1} parent=1 // pred_fallthru
      _
    // Predicated region
    $region146: #{bert_forward.1} parent=1 // pred_check
      _
    $region147: #{bert_forward.1} parent=1 // pred_check_branch
      %160 = sbr.rel (0) target = $region149
    $region148: #{bert_forward.1} parent=1 // pred_region
      _
    $region149: #{bert_forward.1} parent=1 // pred_fallthru
      _
    %v161 = vlaneseq
    %v162 = vand.u32 %v161, 127
    %v163 = vld [vmem:[%s1] sm:$0xff]
    %v164 = vld [vmem:[%s1 + $0x8] sm:$0xff]
    %165 = vset.pattern.permute.xlu0 0
    %166 = vperm.xlu0 %165, %v163
    %v167 = vpop.permute.xlu0 %166
    %168 = vset.pattern.permute.xlu0 0
    %169 = vperm.xlu0 %168, %v164
    %v170 = vpop.permute.xlu0 %169
    %vm171 = vcmp.eq.s32.totalorder %v167, %v162
    %vm172 = vcmp.eq.s32.totalorder %v170, %v162
    %v173 = vsel %vm171, 1, 0
    %v174 = vsel %vm172, 1, 0
    %v175 = vcvt.s32.f32 %v173
    %v176 = vcvt.s32.f32 %v174
    %v177 = vld [vmem:[%s9] sm:$0xff]
    %v178 = vld [vmem:[%s9 + $0x8] sm:$0xff]
    %v179 = vld [vmem:[%s9 + $0x10] sm:$0xff]
    %v180 = vld [vmem:[%s9 + $0x18] sm:$0xff]
    %v181 = vld [vmem:[%s9 + $0x20] sm:$0xff]
    %v182 = vld [vmem:[%s9 + $0x28] sm:$0xff]
    %v183 = vld [vmem:[%s9 + $0x30] sm:$0x3]
    %v184 = vld [vmem:[%s11] sm:$0xff]
    %v185 = vld [vmem:[%s3] sm:$0xff]
    %v186 = vld [vmem:[%s3 + $0x8] sm:$0xff]
    %v187 = vcvt.s32.f32 %v185
    %v188 = vcvt.s32.f32 %v186
    %v189 = vld [vmem:[%s13] sm:$0x1]
    %v190 = vld [vmem:[%s13 + $0x1] sm:$0x1]
    %v191 = vsub.f32 %v190, %v189
    %193 = vset.pattern.permute.xlu0 0
    %194 = vperm.xlu0 %193, %v187
    %v195 = vpop.permute.xlu0 %194
    %198 = vset.pattern.permute.xlu0 0
    %199 = vperm.xlu0 %198, %v188
    %v200 = vpop.permute.xlu0 %199
    %v202 = vperm.slane %v191, 0
    %v203 = vmul.f32 %v195, %v202
    %v204 = vmul.f32 %v200, %v202
    %v205 = vperm.slane %v189, 0
    %v206 = vadd.f32 %v205, %v203
    %v207 = vadd.f32 %v205, %v204
    %vm208 = vcmask 408576
    %v210 = vsel %vm208, %v175, 0
    %v213 = vsel %vm208, %v176, 0
    %vm215 = vcmask 1041408
    %v217 = vsel %vm215, %v183, 0
    %219 = vmatpush.msra.mxu0 0.0
    %220 = vmatpush.msra.mxu0 0.0
    %221 = vmatpush.msra.mxu0 0.0
    %222 = vmatpush.msra.mxu0 0.0
    %223 = vmatpush.msra.mxu0 0.0
    %224 = vmatpush.msra.mxu0 0.0
    %225 = vmatpush.msra.mxu0 0.0
    %226 = vmatpush.msra.mxu0 0.0
    %227 = vmatpush.msra.mxu0 0.0
    %228 = vmatpush.msra.mxu0 %v217
    %229 = vmatpush.msra.mxu0 %v182
    %230 = vmatpush.msra.mxu0 %v181
    %231 = vmatpush.msra.mxu0 %v180
    %232 = vmatpush.msra.mxu0 %v179
    %233 = vmatpush.msra.mxu0 %v178
    %234 = vmatpush.msra.mxu0 %v177
    %235 = vmatmul.f32.gmra.mxu0 %v210
    %v236 = vpop.f32.mrf.mxu0
    %v237 = vadd.f32 %v184, %v236
    %238 = vmatmul.f32.gmra.mxu0 %v213
    %v239 = vpop.f32.mrf.mxu0
    %v240 = vadd.f32 %v184, %v239
    %241 = vdwg.mxu0
    %v242 = vadd.f32 %v237, %v206
    %v243 = vadd.f32 %v240, %v207
    %v244 = vld [vmem:[%s15] sm:$0x1]
    %v245 = vld [vmem:[%s17] sm:$0x1]
    %vm246 = vcmask 261120
    %v247 = vsel %vm246, %v242, 0.0
    %248 = vadd.xlane.f32.xlu0 %v247
    %v249 = vpop.xlane.xlu0 %248
    %v250 = vsel %vm246, %v243, 0.0
    %251 = vadd.xlane.f32.xlu0 %v250
    %v252 = vpop.xlane.xlu0 %251
    %v253 = vrcp.pop 32.0
    %v254 = vmul.f32 32.0, %v253
    %v255 = vsub.f32 1.0, %v254
    %v256 = vmul.f32 %v253, %v255
    %v257 = vadd.f32 %v253, %v256
    %vm258 = vweird.f32 %v253
    %v259 = vsel %vm258, %v253, %v257
    %v260 = vmul.f32 %v249, %v259
    %v261 = vmul.f32 %v252, %v259
    %v262 = vsub.f32 %v242, %v260
    %v263 = vsub.f32 %v243, %v261
    %v264 = vmul.f32 %v262, %v262
    %v265 = vmul.f32 %v263, %v263
    %v266 = vsel %vm246, %v264, 0.0
    %267 = vadd.xlane.f32.xlu0 %v266
    %v268 = vpop.xlane.xlu0 %267
    %v269 = vsel %vm246, %v265, 0.0
    %270 = vadd.xlane.f32.xlu0 %v269
    %v271 = vpop.xlane.xlu0 %270
    %v272 = vmul.f32 %v268, %v259
    %v273 = vmul.f32 %v271, %v259
    %v274 = vadd.f32 %v272, 1e-12
    %v275 = vadd.f32 %v273, 1e-12
    %v276 = vrsqrt.pop %v274
    %v277 = vmul.f32 %v276, %v274
    %v278 = vmul.f32 %v277, %v276
    %v279 = vmul.f32 0.5, %v278
    %v280 = vsub.f32 1.5, %v279
    %v281 = vmul.f32 %v276, %v280
    %vm282 = vweird.f32 %v274
    %vm283 = vweird.f32 %v276
    %vm284 = vmor %vm282, %vm283
    %v285 = vsel %vm284, %v276, %v281
    %v286 = vrsqrt.pop %v275
    %v287 = vmul.f32 %v286, %v275
    %v288 = vmul.f32 %v287, %v286
    %v289 = vmul.f32 0.5, %v288
    %v290 = vsub.f32 1.5, %v289
    %v291 = vmul.f32 %v286, %v290
    %vm292 = vweird.f32 %v275
    %vm293 = vweird.f32 %v286
    %vm294 = vmor %vm292, %vm293
    %v295 = vsel %vm294, %v286, %v291
    %v296 = vmul.f32 %v262, %v285
    %v297 = vmul.f32 %v263, %v295
    %v299 = vperm.slane %v244, 0
    %v301 = vmul.f32 %v296, %v299
    %v302 = vmul.f32 %v297, %v299
    %v304 = vperm.slane %v245, 0
    %v306 = vadd.f32 %v301, %v304
    %v307 = vadd.f32 %v302, %v304
    %v308 = vld [vmem:[%s5] sm:$0x3]
    %v309 = vsub.f32 1.0, %v308
    %v310 = vmul.f32 %v309, -10000.0
    %v311 = vld [vmem:[%s19] sm:$0xff]
    %v312 = vld [vmem:[%s19 + $0x8] sm:$0xff]
    %v313 = vld [vmem:[%s19 + $0x10] sm:$0xff]
    %v314 = vld [vmem:[%s19 + $0x18] sm:$0xff]
    %v315 = vld [vmem:[%s21] sm:$0x1]
    %v317 = vperm.slane %v315, 0
    %v320 = vsel %vm246, %v306, 0
    %v323 = vsel %vm246, %v307, 0
    %325 = vmatpush.msra.mxu0 0.0
    %326 = vmatpush.msra.mxu0 0.0
    %327 = vmatpush.msra.mxu0 0.0
    %328 = vmatpush.msra.mxu0 0.0
    %329 = vmatpush.msra.mxu0 0.0
    %330 = vmatpush.msra.mxu0 0.0
    %331 = vmatpush.msra.mxu0 0.0
    %332 = vmatpush.msra.mxu0 0.0
    %333 = vmatpush.msra.mxu0 0.0
    %334 = vmatpush.msra.mxu0 0.0
    %335 = vmatpush.msra.mxu0 0.0
    %336 = vmatpush.msra.mxu0 0.0
    %337 = vmatpush.msra.mxu0 %v314
    %338 = vmatpush.msra.mxu0 %v313
    %339 = vmatpush.msra.mxu0 %v312
    %340 = vmatpush.msra.mxu0 %v311
    %341 = vmatmul.f32.gmra.mxu0 %v320
    %v342 = vpop.f32.mrf.mxu0
    %v343 = vadd.f32 %v317, %v342
    %344 = vmatmul.f32.gmra.mxu0 %v323
    %v345 = vpop.f32.mrf.mxu0
    %v346 = vadd.f32 %v317, %v345
    %347 = vdwg.mxu0
    %349 = vrot.lane.b32.xlu0 %v343, 96
    %v350 = vpop.permute.xlu0 %349
    %vm351 = vcmask 130048
    %v352 = vsel %vm351, %v343, 0
    %v354 = vsel %vm351, %v350, 0
    %356 = vmatpush.xpose.msra.mxu0 0.0
    %357 = vmatpush.xpose.msra.mxu0 0.0
    %358 = vmatpush.xpose.msra.mxu0 0.0
    %359 = vmatpush.xpose.msra.mxu0 0.0
    %360 = vmatpush.xpose.msra.mxu0 0.0
    %361 = vmatpush.xpose.msra.mxu0 0.0
    %362 = vmatpush.xpose.msra.mxu0 0.0
    %363 = vmatpush.xpose.msra.mxu0 0.0
    %364 = vmatpush.xpose.msra.mxu0 0.0
    %365 = vmatpush.xpose.msra.mxu0 0.0
    %366 = vmatpush.xpose.msra.mxu0 0.0
    %367 = vmatpush.xpose.msra.mxu0 0.0
    %368 = vmatpush.xpose.msra.mxu0 0.0
    %369 = vmatpush.xpose.msra.mxu0 0.0
    %370 = vmatpush.xpose.msra.mxu0 0.0
    %371 = vmatpush.xpose.msra.mxu0 %v354
    %372 = vmatmul.f32.gmra.mxu0 %v352
    %v373 = vpop.f32.mrf.mxu0
    %v374 = vadd.f32 0.0, %v373
    %375 = vdwg.mxu0
    %v376 = vmul.f32 %v374, 0.25
    %v377 = vperm.slane %v310, 0
    %v378 = vadd.f32 %v376, %v377
    %vm379 = vcmask 64512
    %v380 = vsel %vm379, %v378, -inf
    %381 = vmax.xlane.f32.xlu0 %v380
    %v382 = vpop.xlane.xlu0 %381
    %v383 = vsub.f32 %v378, %v382
    %v384 = vmul.f32 %v383, 1.442695
    %v385 = vpow.pop %v384
    %v386 = vsel %vm379, %v385, 0.0
    %387 = vadd.xlane.f32.xlu0 %v386
    %v388 = vpop.xlane.xlu0 %387
    %v389 = vrcp.pop %v388
    %v390 = vmul.f32 %v385, %v389
    %391 = vrot.lane.b32.xlu0 %v343, 64
    %v392 = vpop.permute.xlu0 %391
    %v395 = vsel %vm379, %v390, 0
    %397 = vmatpush.msra.mxu0 0.0
    %398 = vmatpush.msra.mxu0 0.0
    %399 = vmatpush.msra.mxu0 0.0
    %400 = vmatpush.msra.mxu0 0.0
    %401 = vmatpush.msra.mxu0 0.0
    %402 = vmatpush.msra.mxu0 0.0
    %403 = vmatpush.msra.mxu0 0.0
    %404 = vmatpush.msra.mxu0 0.0
    %405 = vmatpush.msra.mxu0 0.0
    %406 = vmatpush.msra.mxu0 0.0
    %407 = vmatpush.msra.mxu0 0.0
    %408 = vmatpush.msra.mxu0 0.0
    %409 = vmatpush.msra.mxu0 0.0
    %410 = vmatpush.msra.mxu0 0.0
    %411 = vmatpush.msra.mxu0 0.0
    %412 = vmatpush.msra.mxu0 %v392
    %413 = vmatmul.f32.gmra.mxu0 %v395
    %v414 = vpop.f32.mrf.mxu0
    %v415 = vadd.f32 0.0, %v414
    %416 = vdwg.mxu0
    %417 = vrot.lane.b32.xlu0 %v343, 112
    %v418 = vpop.permute.xlu0 %417
    %419 = vrot.lane.b32.xlu0 %v343, 80
    %v420 = vpop.permute.xlu0 %419
    %v421 = vsel %vm351, %v418, 0
    %v423 = vsel %vm351, %v420, 0
    %425 = vmatpush.xpose.msra.mxu0 0.0
    %426 = vmatpush.xpose.msra.mxu0 0.0
    %427 = vmatpush.xpose.msra.mxu0 0.0
    %428 = vmatpush.xpose.msra.mxu0 0.0
    %429 = vmatpush.xpose.msra.mxu0 0.0
    %430 = vmatpush.xpose.msra.mxu0 0.0
    %431 = vmatpush.xpose.msra.mxu0 0.0
    %432 = vmatpush.xpose.msra.mxu0 0.0
    %433 = vmatpush.xpose.msra.mxu0 0.0
    %434 = vmatpush.xpose.msra.mxu0 0.0
    %435 = vmatpush.xpose.msra.mxu0 0.0
    %436 = vmatpush.xpose.msra.mxu0 0.0
    %437 = vmatpush.xpose.msra.mxu0 0.0
    %438 = vmatpush.xpose.msra.mxu0 0.0
    %439 = vmatpush.xpose.msra.mxu0 0.0
    %440 = vmatpush.xpose.msra.mxu0 %v423
    %441 = vmatmul.f32.gmra.mxu0 %v421
    %v442 = vpop.f32.mrf.mxu0
    %v443 = vadd.f32 0.0, %v442
    %444 = vdwg.mxu0
    %v445 = vmul.f32 %v443, 0.25
    %v446 = vadd.f32 %v445, %v377
    %v447 = vsel %vm379, %v446, -inf
    %448 = vmax.xlane.f32.xlu0 %v447
    %v449 = vpop.xlane.xlu0 %448
    %v450 = vsub.f32 %v446, %v449
    %v451 = vmul.f32 %v450, 1.442695
    %v452 = vpow.pop %v451
    %v453 = vsel %vm379, %v452, 0.0
    %454 = vadd.xlane.f32.xlu0 %v453
    %v455 = vpop.xlane.xlu0 %454
    %v456 = vrcp.pop %v455
    %v457 = vmul.f32 %v452, %v456
    %458 = vrot.lane.b32.xlu0 %v343, 48
    %v459 = vpop.permute.xlu0 %458
    %v462 = vsel %vm379, %v457, 0
    %464 = vmatpush.msra.mxu0 0.0
    %465 = vmatpush.msra.mxu0 0.0
    %466 = vmatpush.msra.mxu0 0.0
    %467 = vmatpush.msra.mxu0 0.0
    %468 = vmatpush.msra.mxu0 0.0
    %469 = vmatpush.msra.mxu0 0.0
    %470 = vmatpush.msra.mxu0 0.0
    %471 = vmatpush.msra.mxu0 0.0
    %472 = vmatpush.msra.mxu0 0.0
    %473 = vmatpush.msra.mxu0 0.0
    %474 = vmatpush.msra.mxu0 0.0
    %475 = vmatpush.msra.mxu0 0.0
    %476 = vmatpush.msra.mxu0 0.0
    %477 = vmatpush.msra.mxu0 0.0
    %478 = vmatpush.msra.mxu0 0.0
    %479 = vmatpush.msra.mxu0 %v459
    %480 = vmatmul.f32.gmra.mxu0 %v462
    %v481 = vpop.f32.mrf.mxu0
    %v482 = vadd.f32 0.0, %v481
    %483 = vdwg.mxu0
    %485 = vrot.lane.b32.xlu0 %v482, 16
    %v486 = vpop.permute.xlu0 %485
    %v488 = vsel %vm351, %v415, %v486
    %490 = vrot.lane.b32.xlu0 %v346, 96
    %v491 = vpop.permute.xlu0 %490
    %v492 = vsel %vm351, %v346, 0
    %v494 = vsel %vm351, %v491, 0
    %496 = vmatpush.xpose.msra.mxu0 0.0
    %497 = vmatpush.xpose.msra.mxu0 0.0
    %498 = vmatpush.xpose.msra.mxu0 0.0
    %499 = vmatpush.xpose.msra.mxu0 0.0
    %500 = vmatpush.xpose.msra.mxu0 0.0
    %501 = vmatpush.xpose.msra.mxu0 0.0
    %502 = vmatpush.xpose.msra.mxu0 0.0
    %503 = vmatpush.xpose.msra.mxu0 0.0
    %504 = vmatpush.xpose.msra.mxu0 0.0
    %505 = vmatpush.xpose.msra.mxu0 0.0
    %506 = vmatpush.xpose.msra.mxu0 0.0
    %507 = vmatpush.xpose.msra.mxu0 0.0
    %508 = vmatpush.xpose.msra.mxu0 0.0
    %509 = vmatpush.xpose.msra.mxu0 0.0
    %510 = vmatpush.xpose.msra.mxu0 0.0
    %511 = vmatpush.xpose.msra.mxu0 %v494
    %512 = vmatmul.f32.gmra.mxu0 %v492
    %v513 = vpop.f32.mrf.mxu0
    %v514 = vadd.f32 0.0, %v513
    %515 = vdwg.mxu0
    %v516 = vmul.f32 %v514, 0.25
    %v517 = vperm.slane %v310, 1
    %v518 = vadd.f32 %v516, %v517
    %v519 = vsel %vm379, %v518, -inf
    %520 = vmax.xlane.f32.xlu0 %v519
    %v521 = vpop.xlane.xlu0 %520
    %v522 = vsub.f32 %v518, %v521
    %v523 = vmul.f32 %v522, 1.442695
    %v524 = vpow.pop %v523
    %v525 = vsel %vm379, %v524, 0.0
    %526 = vadd.xlane.f32.xlu0 %v525
    %v527 = vpop.xlane.xlu0 %526
    %v528 = vrcp.pop %v527
    %v529 = vmul.f32 %v524, %v528
    %530 = vrot.lane.b32.xlu0 %v346, 64
    %v531 = vpop.permute.xlu0 %530
    %v534 = vsel %vm379, %v529, 0
    %536 = vmatpush.msra.mxu0 0.0
    %537 = vmatpush.msra.mxu0 0.0
    %538 = vmatpush.msra.mxu0 0.0
    %539 = vmatpush.msra.mxu0 0.0
    %540 = vmatpush.msra.mxu0 0.0
    %541 = vmatpush.msra.mxu0 0.0
    %542 = vmatpush.msra.mxu0 0.0
    %543 = vmatpush.msra.mxu0 0.0
    %544 = vmatpush.msra.mxu0 0.0
    %545 = vmatpush.msra.mxu0 0.0
    %546 = vmatpush.msra.mxu0 0.0
    %547 = vmatpush.msra.mxu0 0.0
    %548 = vmatpush.msra.mxu0 0.0
    %549 = vmatpush.msra.mxu0 0.0
    %550 = vmatpush.msra.mxu0 0.0
    %551 = vmatpush.msra.mxu0 %v531
    %552 = vmatmul.f32.gmra.mxu0 %v534
    %v553 = vpop.f32.mrf.mxu0
    %v554 = vadd.f32 0.0, %v553
    %555 = vdwg.mxu0
    %556 = vrot.lane.b32.xlu0 %v346, 112
    %v557 = vpop.permute.xlu0 %556
    %558 = vrot.lane.b32.xlu0 %v346, 80
    %v559 = vpop.permute.xlu0 %558
    %v560 = vsel %vm351, %v557, 0
    %v562 = vsel %vm351, %v559, 0
    %564 = vmatpush.xpose.msra.mxu0 0.0
    %565 = vmatpush.xpose.msra.mxu0 0.0
    %566 = vmatpush.xpose.msra.mxu0 0.0
    %567 = vmatpush.xpose.msra.mxu0 0.0
    %568 = vmatpush.xpose.msra.mxu0 0.0
    %569 = vmatpush.xpose.msra.mxu0 0.0
    %570 = vmatpush.xpose.msra.mxu0 0.0
    %571 = vmatpush.xpose.msra.mxu0 0.0
    %572 = vmatpush.xpose.msra.mxu0 0.0
    %573 = vmatpush.xpose.msra.mxu0 0.0
    %574 = vmatpush.xpose.msra.mxu0 0.0
    %575 = vmatpush.xpose.msra.mxu0 0.0
    %576 = vmatpush.xpose.msra.mxu0 0.0
    %577 = vmatpush.xpose.msra.mxu0 0.0
    %578 = vmatpush.xpose.msra.mxu0 0.0
    %579 = vmatpush.xpose.msra.mxu0 %v562
    %580 = vmatmul.f32.gmra.mxu0 %v560
    %v581 = vpop.f32.mrf.mxu0
    %v582 = vadd.f32 0.0, %v581
    %583 = vdwg.mxu0
    %v584 = vmul.f32 %v582, 0.25
    %v585 = vadd.f32 %v584, %v517
    %v586 = vsel %vm379, %v585, -inf
    %587 = vmax.xlane.f32.xlu0 %v586
    %v588 = vpop.xlane.xlu0 %587
    %v589 = vsub.f32 %v585, %v588
    %v590 = vmul.f32 %v589, 1.442695
    %v591 = vpow.pop %v590
    %v592 = vsel %vm379, %v591, 0.0
    %593 = vadd.xlane.f32.xlu0 %v592
    %v594 = vpop.xlane.xlu0 %593
    %v595 = vrcp.pop %v594
    %v596 = vmul.f32 %v591, %v595
    %597 = vrot.lane.b32.xlu0 %v346, 48
    %v598 = vpop.permute.xlu0 %597
    %v601 = vsel %vm379, %v596, 0
    %603 = vmatpush.msra.mxu0 0.0
    %604 = vmatpush.msra.mxu0 0.0
    %605 = vmatpush.msra.mxu0 0.0
    %606 = vmatpush.msra.mxu0 0.0
    %607 = vmatpush.msra.mxu0 0.0
    %608 = vmatpush.msra.mxu0 0.0
    %609 = vmatpush.msra.mxu0 0.0
    %610 = vmatpush.msra.mxu0 0.0
    %611 = vmatpush.msra.mxu0 0.0
    %612 = vmatpush.msra.mxu0 0.0
    %613 = vmatpush.msra.mxu0 0.0
    %614 = vmatpush.msra.mxu0 0.0
    %615 = vmatpush.msra.mxu0 0.0
    %616 = vmatpush.msra.mxu0 0.0
    %617 = vmatpush.msra.mxu0 0.0
    %618 = vmatpush.msra.mxu0 %v598
    %619 = vmatmul.f32.gmra.mxu0 %v601
    %v620 = vpop.f32.mrf.mxu0
    %v621 = vadd.f32 0.0, %v620
    %622 = vdwg.mxu0
    %624 = vrot.lane.b32.xlu0 %v621, 16
    %v625 = vpop.permute.xlu0 %624
    %v627 = vsel %vm351, %v554, %v625
    %v628 = vld [vmem:[%s23] sm:$0xff]
    %v629 = vld [vmem:[%s23 + $0x8] sm:$0xff]
    %v630 = vld [vmem:[%s23 + $0x10] sm:$0xff]
    %v631 = vld [vmem:[%s23 + $0x18] sm:$0xff]
    %v632 = vld [vmem:[%s25] sm:$0x1]
    %v634 = vperm.slane %v632, 0
    %v637 = vsel %vm246, %v488, 0
    %v640 = vsel %vm246, %v627, 0
    %642 = vmatpush.msra.mxu0 0.0
    %643 = vmatpush.msra.mxu0 0.0
    %644 = vmatpush.msra.mxu0 0.0
    %645 = vmatpush.msra.mxu0 0.0
    %646 = vmatpush.msra.mxu0 0.0
    %647 = vmatpush.msra.mxu0 0.0
    %648 = vmatpush.msra.mxu0 0.0
    %649 = vmatpush.msra.mxu0 0.0
    %650 = vmatpush.msra.mxu0 0.0
    %651 = vmatpush.msra.mxu0 0.0
    %652 = vmatpush.msra.mxu0 0.0
    %653 = vmatpush.msra.mxu0 0.0
    %654 = vmatpush.msra.mxu0 %v631
    %655 = vmatpush.msra.mxu0 %v630
    %656 = vmatpush.msra.mxu0 %v629
    %657 = vmatpush.msra.mxu0 %v628
    %658 = vmatmul.f32.gmra.mxu0 %v637
    %v659 = vpop.f32.mrf.mxu0
    %v660 = vadd.f32 %v634, %v659
    %661 = vmatmul.f32.gmra.mxu0 %v640
    %v662 = vpop.f32.mrf.mxu0
    %v663 = vadd.f32 %v634, %v662
    %664 = vdwg.mxu0
    %v665 = vadd.f32 %v660, %v306
    %v666 = vadd.f32 %v663, %v307
    %v667 = vld [vmem:[%s27] sm:$0x1]
    %v668 = vld [vmem:[%s29] sm:$0x1]
    %v669 = vsel %vm246, %v665, 0.0
    %670 = vadd.xlane.f32.xlu0 %v669
    %v671 = vpop.xlane.xlu0 %670
    %v672 = vsel %vm246, %v666, 0.0
    %673 = vadd.xlane.f32.xlu0 %v672
    %v674 = vpop.xlane.xlu0 %673
    %v675 = vmul.f32 %v671, %v259
    %v676 = vmul.f32 %v674, %v259
    %v677 = vsub.f32 %v665, %v675
    %v678 = vsub.f32 %v666, %v676
    %v679 = vmul.f32 %v677, %v677
    %v680 = vmul.f32 %v678, %v678
    %v681 = vsel %vm246, %v679, 0.0
    %682 = vadd.xlane.f32.xlu0 %v681
    %v683 = vpop.xlane.xlu0 %682
    %v684 = vsel %vm246, %v680, 0.0
    %685 = vadd.xlane.f32.xlu0 %v684
    %v686 = vpop.xlane.xlu0 %685
    %v687 = vmul.f32 %v683, %v259
    %v688 = vmul.f32 %v686, %v259
    %v689 = vadd.f32 %v687, 1e-12
    %v690 = vadd.f32 %v688, 1e-12
    %v691 = vrsqrt.pop %v689
    %v692 = vmul.f32 %v691, %v689
    %v693 = vmul.f32 %v692, %v691
    %v694 = vmul.f32 0.5, %v693
    %v695 = vsub.f32 1.5, %v694
    %v696 = vmul.f32 %v691, %v695
    %vm697 = vweird.f32 %v689
    %vm698 = vweird.f32 %v691
    %vm699 = vmor %vm697, %vm698
    %v700 = vsel %vm699, %v691, %v696
    %v701 = vrsqrt.pop %v690
    %v702 = vmul.f32 %v701, %v690
    %v703 = vmul.f32 %v702, %v701
    %v704 = vmul.f32 0.5, %v703
    %v705 = vsub.f32 1.5, %v704
    %v706 = vmul.f32 %v701, %v705
    %vm707 = vweird.f32 %v690
    %vm708 = vweird.f32 %v701
    %vm709 = vmor %vm707, %vm708
    %v710 = vsel %vm709, %v701, %v706
    %v711 = vmul.f32 %v677, %v700
    %v712 = vmul.f32 %v678, %v710
    %v714 = vperm.slane %v667, 0
    %v716 = vmul.f32 %v711, %v714
    %v717 = vmul.f32 %v712, %v714
    %v719 = vperm.slane %v668, 0
    %v721 = vadd.f32 %v716, %v719
    %v722 = vadd.f32 %v717, %v719
    %v723 = vld [vmem:[%s31] sm:$0xff]
    %v724 = vld [vmem:[%s31 + $0x8] sm:$0xff]
    %v725 = vld [vmem:[%s31 + $0x10] sm:$0xff]
    %v726 = vld [vmem:[%s31 + $0x18] sm:$0xff]
    %v727 = vld [vmem:[%s33] sm:$0x1]
    %v729 = vperm.slane %v727, 0
    %v732 = vsel %vm246, %v721, 0
    %v735 = vsel %vm246, %v722, 0
    %737 = vmatpush.msra.mxu0 0.0
    %738 = vmatpush.msra.mxu0 0.0
    %739 = vmatpush.msra.mxu0 0.0
    %740 = vmatpush.msra.mxu0 0.0
    %741 = vmatpush.msra.mxu0 0.0
    %742 = vmatpush.msra.mxu0 0.0
    %743 = vmatpush.msra.mxu0 0.0
    %744 = vmatpush.msra.mxu0 0.0
    %745 = vmatpush.msra.mxu0 0.0
    %746 = vmatpush.msra.mxu0 0.0
    %747 = vmatpush.msra.mxu0 0.0
    %748 = vmatpush.msra.mxu0 0.0
    %749 = vmatpush.msra.mxu0 %v726
    %750 = vmatpush.msra.mxu0 %v725
    %751 = vmatpush.msra.mxu0 %v724
    %752 = vmatpush.msra.mxu0 %v723
    %753 = vmatmul.f32.gmra.mxu0 %v732
    %v754 = vpop.f32.mrf.mxu0
    %v755 = vadd.f32 %v729, %v754
    %756 = vmatmul.f32.gmra.mxu0 %v735
    %v757 = vpop.f32.mrf.mxu0
    %v758 = vadd.f32 %v729, %v757
    %759 = vdwg.mxu0
    %v760 = vmul.f32 %v755, 0.5
    %v761 = vmul.f32 %v758, 0.5
    %v762 = vmul.f32 %v755, 0.044715
    %v763 = vmul.f32 %v758, 0.044715
    %v764 = vmul.f32 %v762, %v755
    %v765 = vmul.f32 %v763, %v758
    %v766 = vmul.f32 %v764, %v755
    %v767 = vmul.f32 %v765, %v758
    %v768 = vadd.f32 %v755, %v766
    %v769 = vadd.f32 %v758, %v767
    %v770 = vmul.f32 %v768, 0.7978846
    %v771 = vmul.f32 %v769, 0.7978846
    %v772 = vtanh.pop %v770
    %v773 = vtanh.pop %v771
    %v774 = vadd.f32 %v772, 1.0
    %v775 = vadd.f32 %v773, 1.0
    %v776 = vmul.f32 %v760, %v774
    %v777 = vmul.f32 %v761, %v775
    %v778 = vld [vmem:[%s35] sm:$0xff]
    %v779 = vld [vmem:[%s35 + $0x8] sm:$0xff]
    %v780 = vld [vmem:[%s35 + $0x10] sm:$0xff]
    %v781 = vld [vmem:[%s35 + $0x18] sm:$0xff]
    %v782 = vld [vmem:[%s35 + $0x20] sm:$0xff]
    %v783 = vld [vmem:[%s35 + $0x28] sm:$0xff]
    %v784 = vld [vmem:[%s35 + $0x30] sm:$0xff]
    %v785 = vld [vmem:[%s35 + $0x38] sm:$0xff]
    %v786 = vld [vmem:[%s37] sm:$0x1]
    %v788 = vperm.slane %v786, 0
    %vm790 = vcmask 523264
    %v792 = vsel %vm790, %v776, 0
    %v795 = vsel %vm790, %v777, 0
    %797 = vmatpush.msra.mxu0 0.0
    %798 = vmatpush.msra.mxu0 0.0
    %799 = vmatpush.msra.mxu0 0.0
    %800 = vmatpush.msra.mxu0 0.0
    %801 = vmatpush.msra.mxu0 0.0
    %802 = vmatpush.msra.mxu0 0.0
    %803 = vmatpush.msra.mxu0 0.0
    %804 = vmatpush.msra.mxu0 0.0
    %805 = vmatpush.msra.mxu0 %v785
    %806 = vmatpush.msra.mxu0 %v784
    %807 = vmatpush.msra.mxu0 %v783
    %808 = vmatpush.msra.mxu0 %v782
    %809 = vmatpush.msra.mxu0 %v781
    %810 = vmatpush.msra.mxu0 %v780
    %811 = vmatpush.msra.mxu0 %v779
    %812 = vmatpush.msra.mxu0 %v778
    %813 = vmatmul.f32.gmra.mxu0 %v792
    %v814 = vpop.f32.mrf.mxu0
    %v815 = vadd.f32 %v788, %v814
    %816 = vmatmul.f32.gmra.mxu0 %v795
    %v817 = vpop.f32.mrf.mxu0
    %v818 = vadd.f32 %v788, %v817
    %819 = vdwg.mxu0
    %v820 = vadd.f32 %v815, %v721
    %v821 = vadd.f32 %v818, %v722
    %v822 = vld [vmem:[%s39] sm:$0x1]
    %v823 = vld [vmem:[%s41] sm:$0x1]
    %v824 = vsel %vm246, %v820, 0.0
    %825 = vadd.xlane.f32.xlu0 %v824
    %v826 = vpop.xlane.xlu0 %825
    %v827 = vsel %vm246, %v821, 0.0
    %828 = vadd.xlane.f32.xlu0 %v827
    %v829 = vpop.xlane.xlu0 %828
    %v830 = vmul.f32 %v826, %v259
    %v831 = vmul.f32 %v829, %v259
    %v832 = vsub.f32 %v820, %v830
    %v833 = vsub.f32 %v821, %v831
    %v834 = vmul.f32 %v832, %v832
    %v835 = vmul.f32 %v833, %v833
    %v836 = vsel %vm246, %v834, 0.0
    %837 = vadd.xlane.f32.xlu0 %v836
    %v838 = vpop.xlane.xlu0 %837
    %v839 = vsel %vm246, %v835, 0.0
    %840 = vadd.xlane.f32.xlu0 %v839
    %v841 = vpop.xlane.xlu0 %840
    %v842 = vmul.f32 %v838, %v259
    %v843 = vmul.f32 %v841, %v259
    %v844 = vadd.f32 %v842, 1e-12
    %v845 = vadd.f32 %v843, 1e-12
    %v846 = vrsqrt.pop %v844
    %v847 = vmul.f32 %v846, %v844
    %v848 = vmul.f32 %v847, %v846
    %v849 = vmul.f32 0.5, %v848
    %v850 = vsub.f32 1.5, %v849
    %v851 = vmul.f32 %v846, %v850
    %vm852 = vweird.f32 %v844
    %vm853 = vweird.f32 %v846
    %vm854 = vmor %vm852, %vm853
    %v855 = vsel %vm854, %v846, %v851
    %v856 = vrsqrt.pop %v845
    %v857 = vmul.f32 %v856, %v845
    %v858 = vmul.f32 %v857, %v856
    %v859 = vmul.f32 0.5, %v858
    %v860 = vsub.f32 1.5, %v859
    %v861 = vmul.f32 %v856, %v860
    %vm862 = vweird.f32 %v845
    %vm863 = vweird.f32 %v856
    %vm864 = vmor %vm862, %vm863
    %v865 = vsel %vm864, %v856, %v861
    %v866 = vmul.f32 %v832, %v855
    %v867 = vmul.f32 %v833, %v865
    %v869 = vperm.slane %v822, 0
    %v871 = vmul.f32 %v866, %v869
    %v872 = vmul.f32 %v867, %v869
    %v874 = vperm.slane %v823, 0
    %v876 = vadd.f32 %v871, %v874
    %v877 = vadd.f32 %v872, %v874
    %v878 = vld [vmem:[%s43] sm:$0xff]
    %v879 = vld [vmem:[%s43 + $0x8] sm:$0xff]
    %v880 = vld [vmem:[%s43 + $0x10] sm:$0xff]
    %v881 = vld [vmem:[%s43 + $0x18] sm:$0xff]
    %v882 = vld [vmem:[%s45] sm:$0x1]
    %v884 = vperm.slane %v882, 0
    %v887 = vsel %vm246, %v876, 0
    %v890 = vsel %vm246, %v877, 0
    %892 = vmatpush.msra.mxu0 0.0
    %893 = vmatpush.msra.mxu0 0.0
    %894 = vmatpush.msra.mxu0 0.0
    %895 = vmatpush.msra.mxu0 0.0
    %896 = vmatpush.msra.mxu0 0.0
    %897 = vmatpush.msra.mxu0 0.0
    %898 = vmatpush.msra.mxu0 0.0
    %899 = vmatpush.msra.mxu0 0.0
    %900 = vmatpush.msra.mxu0 0.0
    %901 = vmatpush.msra.mxu0 0.0
    %902 = vmatpush.msra.mxu0 0.0
    %903 = vmatpush.msra.mxu0 0.0
    %904 = vmatpush.msra.mxu0 %v881
    %905 = vmatpush.msra.mxu0 %v880
    %906 = vmatpush.msra.mxu0 %v879
    %907 = vmatpush.msra.mxu0 %v878
    %908 = vmatmul.f32.gmra.mxu0 %v887
    %v909 = vpop.f32.mrf.mxu0
    %v910 = vadd.f32 %v884, %v909
    %911 = vmatmul.f32.gmra.mxu0 %v890
    %v912 = vpop.f32.mrf.mxu0
    %v913 = vadd.f32 %v884, %v912
    %914 = vdwg.mxu0
    %916 = vrot.lane.b32.xlu0 %v910, 96
    %v917 = vpop.permute.xlu0 %916
    %v918 = vsel %vm351, %v910, 0
    %v920 = vsel %vm351, %v917, 0
    %922 = vmatpush.xpose.msra.mxu0 0.0
    %923 = vmatpush.xpose.msra.mxu0 0.0
    %924 = vmatpush.xpose.msra.mxu0 0.0
    %925 = vmatpush.xpose.msra.mxu0 0.0
    %926 = vmatpush.xpose.msra.mxu0 0.0
    %927 = vmatpush.xpose.msra.mxu0 0.0
    %928 = vmatpush.xpose.msra.mxu0 0.0
    %929 = vmatpush.xpose.msra.mxu0 0.0
    %930 = vmatpush.xpose.msra.mxu0 0.0
    %931 = vmatpush.xpose.msra.mxu0 0.0
    %932 = vmatpush.xpose.msra.mxu0 0.0
    %933 = vmatpush.xpose.msra.mxu0 0.0
    %934 = vmatpush.xpose.msra.mxu0 0.0
    %935 = vmatpush.xpose.msra.mxu0 0.0
    %936 = vmatpush.xpose.msra.mxu0 0.0
    %937 = vmatpush.xpose.msra.mxu0 %v920
    %938 = vmatmul.f32.gmra.mxu0 %v918
    %v939 = vpop.f32.mrf.mxu0
    %v940 = vadd.f32 0.0, %v939
    %941 = vdwg.mxu0
    %v942 = vmul.f32 %v940, 0.25
    %v943 = vadd.f32 %v942, %v377
    %v944 = vsel %vm379, %v943, -inf
    %945 = vmax.xlane.f32.xlu0 %v944
    %v946 = vpop.xlane.xlu0 %945
    %v947 = vsub.f32 %v943, %v946
    %v948 = vmul.f32 %v947, 1.442695
    %v949 = vpow.pop %v948
    %v950 = vsel %vm379, %v949, 0.0
    %951 = vadd.xlane.f32.xlu0 %v950
    %v952 = vpop.xlane.xlu0 %951
    %v953 = vrcp.pop %v952
    %v954 = vmul.f32 %v949, %v953
    %955 = vrot.lane.b32.xlu0 %v910, 64
    %v956 = vpop.permute.xlu0 %955
    %v959 = vsel %vm379, %v954, 0
    %961 = vmatpush.msra.mxu0 0.0
    %962 = vmatpush.msra.mxu0 0.0
    %963 = vmatpush.msra.mxu0 0.0
    %964 = vmatpush.msra.mxu0 0.0
    %965 = vmatpush.msra.mxu0 0.0
    %966 = vmatpush.msra.mxu0 0.0
    %967 = vmatpush.msra.mxu0 0.0
    %968 = vmatpush.msra.mxu0 0.0
    %969 = vmatpush.msra.mxu0 0.0
    %970 = vmatpush.msra.mxu0 0.0
    %971 = vmatpush.msra.mxu0 0.0
    %972 = vmatpush.msra.mxu0 0.0
    %973 = vmatpush.msra.mxu0 0.0
    %974 = vmatpush.msra.mxu0 0.0
    %975 = vmatpush.msra.mxu0 0.0
    %976 = vmatpush.msra.mxu0 %v956
    %977 = vmatmul.f32.gmra.mxu0 %v959
    %v978 = vpop.f32.mrf.mxu0
    %v979 = vadd.f32 0.0, %v978
    %980 = vdwg.mxu0
    %981 = vrot.lane.b32.xlu0 %v910, 112
    %v982 = vpop.permute.xlu0 %981
    %983 = vrot.lane.b32.xlu0 %v910, 80
    %v984 = vpop.permute.xlu0 %983
    %v985 = vsel %vm351, %v982, 0
    %v987 = vsel %vm351, %v984, 0
    %989 = vmatpush.xpose.msra.mxu0 0.0
    %990 = vmatpush.xpose.msra.mxu0 0.0
    %991 = vmatpush.xpose.msra.mxu0 0.0
    %992 = vmatpush.xpose.msra.mxu0 0.0
    %993 = vmatpush.xpose.msra.mxu0 0.0
    %994 = vmatpush.xpose.msra.mxu0 0.0
    %995 = vmatpush.xpose.msra.mxu0 0.0
    %996 = vmatpush.xpose.msra.mxu0 0.0
    %997 = vmatpush.xpose.msra.mxu0 0.0
    %998 = vmatpush.xpose.msra.mxu0 0.0
    %999 = vmatpush.xpose.msra.mxu0 0.0
    %1000 = vmatpush.xpose.msra.mxu0 0.0
    %1001 = vmatpush.xpose.msra.mxu0 0.0
    %1002 = vmatpush.xpose.msra.mxu0 0.0
    %1003 = vmatpush.xpose.msra.mxu0 0.0
    %1004 = vmatpush.xpose.msra.mxu0 %v987
    %1005 = vmatmul.f32.gmra.mxu0 %v985
    %v1006 = vpop.f32.mrf.mxu0
    %v1007 = vadd.f32 0.0, %v1006
    %1008 = vdwg.mxu0
    %v1009 = vmul.f32 %v1007, 0.25
    %v1010 = vadd.f32 %v1009, %v377
    %v1011 = vsel %vm379, %v1010, -inf
    %1012 = vmax.xlane.f32.xlu0 %v1011
    %v1013 = vpop.xlane.xlu0 %1012
    %v1014 = vsub.f32 %v1010, %v1013
    %v1015 = vmul.f32 %v1014, 1.442695
    %v1016 = vpow.pop %v1015
    %v1017 = vsel %vm379, %v1016, 0.0
    %1018 = vadd.xlane.f32.xlu0 %v1017
    %v1019 = vpop.xlane.xlu0 %1018
    %v1020 = vrcp.pop %v1019
    %v1021 = vmul.f32 %v1016, %v1020
    %1022 = vrot.lane.b32.xlu0 %v910, 48
    %v1023 = vpop.permute.xlu0 %1022
    %v1026 = vsel %vm379, %v1021, 0
    %1028 = vmatpush.msra.mxu0 0.0
    %1029 = vmatpush.msra.mxu0 0.0
    %1030 = vmatpush.msra.mxu0 0.0
    %1031 = vmatpush.msra.mxu0 0.0
    %1032 = vmatpush.msra.mxu0 0.0
    %1033 = vmatpush.msra.mxu0 0.0
    %1034 = vmatpush.msra.mxu0 0.0
    %1035 = vmatpush.msra.mxu0 0.0
    %1036 = vmatpush.msra.mxu0 0.0
    %1037 = vmatpush.msra.mxu0 0.0
    %1038 = vmatpush.msra.mxu0 0.0
    %1039 = vmatpush.msra.mxu0 0.0
    %1040 = vmatpush.msra.mxu0 0.0
    %1041 = vmatpush.msra.mxu0 0.0
    %1042 = vmatpush.msra.mxu0 0.0
    %1043 = vmatpush.msra.mxu0 %v1023
    %1044 = vmatmul.f32.gmra.mxu0 %v1026
    %v1045 = vpop.f32.mrf.mxu0
    %v1046 = vadd.f32 0.0, %v1045
    %1047 = vdwg.mxu0
    %1049 = vrot.lane.b32.xlu0 %v1046, 16
    %v1050 = vpop.permute.xlu0 %1049
    %v1052 = vsel %vm351, %v979, %v1050
    %1054 = vrot.lane.b32.xlu0 %v913, 96
    %v1055 = vpop.permute.xlu0 %1054
    %v1056 = vsel %vm351, %v913, 0
    %v1058 = vsel %vm351, %v1055, 0
    %1060 = vmatpush.xpose.msra.mxu0 0.0
    %1061 = vmatpush.xpose.msra.mxu0 0.0
    %1062 = vmatpush.xpose.msra.mxu0 0.0
    %1063 = vmatpush.xpose.msra.mxu0 0.0
    %1064 = vmatpush.xpose.msra.mxu0 0.0
    %1065 = vmatpush.xpose.msra.mxu0 0.0
    %1066 = vmatpush.xpose.msra.mxu0 0.0
    %1067 = vmatpush.xpose.msra.mxu0 0.0
    %1068 = vmatpush.xpose.msra.mxu0 0.0
    %1069 = vmatpush.xpose.msra.mxu0 0.0
    %1070 = vmatpush.xpose.msra.mxu0 0.0
    %1071 = vmatpush.xpose.msra.mxu0 0.0
    %1072 = vmatpush.xpose.msra.mxu0 0.0
    %1073 = vmatpush.xpose.msra.mxu0 0.0
    %1074 = vmatpush.xpose.msra.mxu0 0.0
    %1075 = vmatpush.xpose.msra.mxu0 %v1058
    %1076 = vmatmul.f32.gmra.mxu0 %v1056
    %v1077 = vpop.f32.mrf.mxu0
    %v1078 = vadd.f32 0.0, %v1077
    %1079 = vdwg.mxu0
    %v1080 = vmul.f32 %v1078, 0.25
    %v1081 = vadd.f32 %v1080, %v517
    %v1082 = vsel %vm379, %v1081, -inf
    %1083 = vmax.xlane.f32.xlu0 %v1082
    %v1084 = vpop.xlane.xlu0 %1083
    %v1085 = vsub.f32 %v1081, %v1084
    %v1086 = vmul.f32 %v1085, 1.442695
    %v1087 = vpow.pop %v1086
    %v1088 = vsel %vm379, %v1087, 0.0
    %1089 = vadd.xlane.f32.xlu0 %v1088
    %v1090 = vpop.xlane.xlu0 %1089
    %v1091 = vrcp.pop %v1090
    %v1092 = vmul.f32 %v1087, %v1091
    %1093 = vrot.lane.b32.xlu0 %v913, 64
    %v1094 = vpop.permute.xlu0 %1093
    %v1097 = vsel %vm379, %v1092, 0
    %1099 = vmatpush.msra.mxu0 0.0
    %1100 = vmatpush.msra.mxu0 0.0
    %1101 = vmatpush.msra.mxu0 0.0
    %1102 = vmatpush.msra.mxu0 0.0
    %1103 = vmatpush.msra.mxu0 0.0
    %1104 = vmatpush.msra.mxu0 0.0
    %1105 = vmatpush.msra.mxu0 0.0
    %1106 = vmatpush.msra.mxu0 0.0
    %1107 = vmatpush.msra.mxu0 0.0
    %1108 = vmatpush.msra.mxu0 0.0
    %1109 = vmatpush.msra.mxu0 0.0
    %1110 = vmatpush.msra.mxu0 0.0
    %1111 = vmatpush.msra.mxu0 0.0
    %1112 = vmatpush.msra.mxu0 0.0
    %1113 = vmatpush.msra.mxu0 0.0
    %1114 = vmatpush.msra.mxu0 %v1094
    %1115 = vmatmul.f32.gmra.mxu0 %v1097
    %v1116 = vpop.f32.mrf.mxu0
    %v1117 = vadd.f32 0.0, %v1116
    %1118 = vdwg.mxu0
    %1119 = vrot.lane.b32.xlu0 %v913, 112
    %v1120 = vpop.permute.xlu0 %1119
    %1121 = vrot.lane.b32.xlu0 %v913, 80
    %v1122 = vpop.permute.xlu0 %1121
    %v1123 = vsel %vm351, %v1120, 0
    %v1125 = vsel %vm351, %v1122, 0
    %1127 = vmatpush.xpose.msra.mxu0 0.0
    %1128 = vmatpush.xpose.msra.mxu0 0.0
    %1129 = vmatpush.xpose.msra.mxu0 0.0
    %1130 = vmatpush.xpose.msra.mxu0 0.0
    %1131 = vmatpush.xpose.msra.mxu0 0.0
    %1132 = vmatpush.xpose.msra.mxu0 0.0
    %1133 = vmatpush.xpose.msra.mxu0 0.0
    %1134 = vmatpush.xpose.msra.mxu0 0.0
    %1135 = vmatpush.xpose.msra.mxu0 0.0
    %1136 = vmatpush.xpose.msra.mxu0 0.0
    %1137 = vmatpush.xpose.msra.mxu0 0.0
    %1138 = vmatpush.xpose.msra.mxu0 0.0
    %1139 = vmatpush.xpose.msra.mxu0 0.0
    %1140 = vmatpush.xpose.msra.mxu0 0.0
    %1141 = vmatpush.xpose.msra.mxu0 0.0
    %1142 = vmatpush.xpose.msra.mxu0 %v1125
    %1143 = vmatmul.f32.gmra.mxu0 %v1123
    %v1144 = vpop.f32.mrf.mxu0
    %v1145 = vadd.f32 0.0, %v1144
    %1146 = vdwg.mxu0
    %v1147 = vmul.f32 %v1145, 0.25
    %v1148 = vadd.f32 %v1147, %v517
    %v1149 = vsel %vm379, %v1148, -inf
    %1150 = vmax.xlane.f32.xlu0 %v1149
    %v1151 = vpop.xlane.xlu0 %1150
    %v1152 = vsub.f32 %v1148, %v1151
    %v1153 = vmul.f32 %v1152, 1.442695
    %v1154 = vpow.pop %v1153
    %v1155 = vsel %vm379, %v1154, 0.0
    %1156 = vadd.xlane.f32.xlu0 %v1155
    %v1157 = vpop.xlane.xlu0 %1156
    %v1158 = vrcp.pop %v1157
    %v1159 = vmul.f32 %v1154, %v1158
    %1160 = vrot.lane.b32.xlu0 %v913, 48
    %v1161 = vpop.permute.xlu0 %1160
    %v1164 = vsel %vm379, %v1159, 0
    %1166 = vmatpush.msra.mxu0 0.0
    %1167 = vmatpush.msra.mxu0 0.0
    %1168 = vmatpush.msra.mxu0 0.0
    %1169 = vmatpush.msra.mxu0 0.0
    %1170 = vmatpush.msra.mxu0 0.0
    %1171 = vmatpush.msra.mxu0 0.0
    %1172 = vmatpush.msra.mxu0 0.0
    %1173 = vmatpush.msra.mxu0 0.0
    %1174 = vmatpush.msra.mxu0 0.0
    %1175 = vmatpush.msra.mxu0 0.0
    %1176 = vmatpush.msra.mxu0 0.0
    %1177 = vmatpush.msra.mxu0 0.0
    %1178 = vmatpush.msra.mxu0 0.0
    %1179 = vmatpush.msra.mxu0 0.0
    %1180 = vmatpush.msra.mxu0 0.0
    %1181 = vmatpush.msra.mxu0 %v1161
    %1182 = vmatmul.f32.gmra.mxu0 %v1164
    %v1183 = vpop.f32.mrf.mxu0
    %v1184 = vadd.f32 0.0, %v1183
    %1185 = vdwg.mxu0
    %1187 = vrot.lane.b32.xlu0 %v1184, 16
    %v1188 = vpop.permute.xlu0 %1187
    %v1190 = vsel %vm351, %v1117, %v1188
    %v1191 = vld [vmem:[%s47] sm:$0xff]
    %v1192 = vld [vmem:[%s47 + $0x8] sm:$0xff]
    %v1193 = vld [vmem:[%s47 + $0x10] sm:$0xff]
    %v1194 = vld [vmem:[%s47 + $0x18] sm:$0xff]
    %v1195 = vld [vmem:[%s49] sm:$0x1]
    %v1197 = vperm.slane %v1195, 0
    %v1200 = vsel %vm246, %v1052, 0
    %v1203 = vsel %vm246, %v1190, 0
    %1205 = vmatpush.msra.mxu0 0.0
    %1206 = vmatpush.msra.mxu0 0.0
    %1207 = vmatpush.msra.mxu0 0.0
    %1208 = vmatpush.msra.mxu0 0.0
    %1209 = vmatpush.msra.mxu0 0.0
    %1210 = vmatpush.msra.mxu0 0.0
    %1211 = vmatpush.msra.mxu0 0.0
    %1212 = vmatpush.msra.mxu0 0.0
    %1213 = vmatpush.msra.mxu0 0.0
    %1214 = vmatpush.msra.mxu0 0.0
    %1215 = vmatpush.msra.mxu0 0.0
    %1216 = vmatpush.msra.mxu0 0.0
    %1217 = vmatpush.msra.mxu0 %v1194
    %1218 = vmatpush.msra.mxu0 %v1193
    %1219 = vmatpush.msra.mxu0 %v1192
    %1220 = vmatpush.msra.mxu0 %v1191
    %1221 = vmatmul.f32.gmra.mxu0 %v1200
    %v1222 = vpop.f32.mrf.mxu0
    %v1223 = vadd.f32 %v1197, %v1222
    %1224 = vmatmul.f32.gmra.mxu0 %v1203
    %v1225 = vpop.f32.mrf.mxu0
    %v1226 = vadd.f32 %v1197, %v1225
    %1227 = vdwg.mxu0
    %v1228 = vadd.f32 %v1223, %v876
    %v1229 = vadd.f32 %v1226, %v877
    %v1230 = vld [vmem:[%s51] sm:$0x1]
    %v1231 = vld [vmem:[%s53] sm:$0x1]
    %v1232 = vsel %vm246, %v1228, 0.0
    %1233 = vadd.xlane.f32.xlu0 %v1232
    %v1234 = vpop.xlane.xlu0 %1233
    %v1235 = vsel %vm246, %v1229, 0.0
    %1236 = vadd.xlane.f32.xlu0 %v1235
    %v1237 = vpop.xlane.xlu0 %1236
    %v1238 = vmul.f32 %v1234, %v259
    %v1239 = vmul.f32 %v1237, %v259
    %v1240 = vsub.f32 %v1228, %v1238
    %v1241 = vsub.f32 %v1229, %v1239
    %v1242 = vmul.f32 %v1240, %v1240
    %v1243 = vmul.f32 %v1241, %v1241
    %v1244 = vsel %vm246, %v1242, 0.0
    %1245 = vadd.xlane.f32.xlu0 %v1244
    %v1246 = vpop.xlane.xlu0 %1245
    %v1247 = vsel %vm246, %v1243, 0.0
    %1248 = vadd.xlane.f32.xlu0 %v1247
    %v1249 = vpop.xlane.xlu0 %1248
    %v1250 = vmul.f32 %v1246, %v259
    %v1251 = vmul.f32 %v1249, %v259
    %v1252 = vadd.f32 %v1250, 1e-12
    %v1253 = vadd.f32 %v1251, 1e-12
    %v1254 = vrsqrt.pop %v1252
    %v1255 = vmul.f32 %v1254, %v1252
    %v1256 = vmul.f32 %v1255, %v1254
    %v1257 = vmul.f32 0.5, %v1256
    %v1258 = vsub.f32 1.5, %v1257
    %v1259 = vmul.f32 %v1254, %v1258
    %vm1260 = vweird.f32 %v1252
    %vm1261 = vweird.f32 %v1254
    %vm1262 = vmor %vm1260, %vm1261
    %v1263 = vsel %vm1262, %v1254, %v1259
    %v1264 = vrsqrt.pop %v1253
    %v1265 = vmul.f32 %v1264, %v1253
    %v1266 = vmul.f32 %v1265, %v1264
    %v1267 = vmul.f32 0.5, %v1266
    %v1268 = vsub.f32 1.5, %v1267
    %v1269 = vmul.f32 %v1264, %v1268
    %vm1270 = vweird.f32 %v1253
    %vm1271 = vweird.f32 %v1264
    %vm1272 = vmor %vm1270, %vm1271
    %v1273 = vsel %vm1272, %v1264, %v1269
    %v1274 = vmul.f32 %v1240, %v1263
    %v1275 = vmul.f32 %v1241, %v1273
    %v1277 = vperm.slane %v1230, 0
    %v1279 = vmul.f32 %v1274, %v1277
    %v1280 = vmul.f32 %v1275, %v1277
    %v1282 = vperm.slane %v1231, 0
    %v1284 = vadd.f32 %v1279, %v1282
    %v1285 = vadd.f32 %v1280, %v1282
    %v1286 = vld [vmem:[%s55] sm:$0xff]
    %v1287 = vld [vmem:[%s55 + $0x8] sm:$0xff]
    %v1288 = vld [vmem:[%s55 + $0x10] sm:$0xff]
    %v1289 = vld [vmem:[%s55 + $0x18] sm:$0xff]
    %v1290 = vld [vmem:[%s57] sm:$0x1]
    %v1292 = vperm.slane %v1290, 0
    %v1295 = vsel %vm246, %v1284, 0
    %v1298 = vsel %vm246, %v1285, 0
    %1300 = vmatpush.msra.mxu0 0.0
    %1301 = vmatpush.msra.mxu0 0.0
    %1302 = vmatpush.msra.mxu0 0.0
    %1303 = vmatpush.msra.mxu0 0.0
    %1304 = vmatpush.msra.mxu0 0.0
    %1305 = vmatpush.msra.mxu0 0.0
    %1306 = vmatpush.msra.mxu0 0.0
    %1307 = vmatpush.msra.mxu0 0.0
    %1308 = vmatpush.msra.mxu0 0.0
    %1309 = vmatpush.msra.mxu0 0.0
    %1310 = vmatpush.msra.mxu0 0.0
    %1311 = vmatpush.msra.mxu0 0.0
    %1312 = vmatpush.msra.mxu0 %v1289
    %1313 = vmatpush.msra.mxu0 %v1288
    %1314 = vmatpush.msra.mxu0 %v1287
    %1315 = vmatpush.msra.mxu0 %v1286
    %1316 = vmatmul.f32.gmra.mxu0 %v1295
    %v1317 = vpop.f32.mrf.mxu0
    %v1318 = vadd.f32 %v1292, %v1317
    %1319 = vmatmul.f32.gmra.mxu0 %v1298
    %v1320 = vpop.f32.mrf.mxu0
    %v1321 = vadd.f32 %v1292, %v1320
    %1322 = vdwg.mxu0
    %v1323 = vmul.f32 %v1318, 0.5
    %v1324 = vmul.f32 %v1321, 0.5
    %v1325 = vmul.f32 %v1318, 0.044715
    %v1326 = vmul.f32 %v1321, 0.044715
    %v1327 = vmul.f32 %v1325, %v1318
    %v1328 = vmul.f32 %v1326, %v1321
    %v1329 = vmul.f32 %v1327, %v1318
    %v1330 = vmul.f32 %v1328, %v1321
    %v1331 = vadd.f32 %v1318, %v1329
    %v1332 = vadd.f32 %v1321, %v1330
    %v1333 = vmul.f32 %v1331, 0.7978846
    %v1334 = vmul.f32 %v1332, 0.7978846
    %v1335 = vtanh.pop %v1333
    %v1336 = vtanh.pop %v1334
    %v1337 = vadd.f32 %v1335, 1.0
    %v1338 = vadd.f32 %v1336, 1.0
    %v1339 = vmul.f32 %v1323, %v1337
    %v1340 = vmul.f32 %v1324, %v1338
    %v1341 = vld [vmem:[%s59] sm:$0xff]
    %v1342 = vld [vmem:[%s59 + $0x8] sm:$0xff]
    %v1343 = vld [vmem:[%s59 + $0x10] sm:$0xff]
    %v1344 = vld [vmem:[%s59 + $0x18] sm:$0xff]
    %v1345 = vld [vmem:[%s59 + $0x20] sm:$0xff]
    %v1346 = vld [vmem:[%s59 + $0x28] sm:$0xff]
    %v1347 = vld [vmem:[%s59 + $0x30] sm:$0xff]
    %v1348 = vld [vmem:[%s59 + $0x38] sm:$0xff]
    %v1349 = vld [vmem:[%s61] sm:$0x1]
    %v1351 = vperm.slane %v1349, 0
    %v1354 = vsel %vm790, %v1339, 0
    %v1357 = vsel %vm790, %v1340, 0
    %1359 = vmatpush.msra.mxu0 0.0
    %1360 = vmatpush.msra.mxu0 0.0
    %1361 = vmatpush.msra.mxu0 0.0
    %1362 = vmatpush.msra.mxu0 0.0
    %1363 = vmatpush.msra.mxu0 0.0
    %1364 = vmatpush.msra.mxu0 0.0
    %1365 = vmatpush.msra.mxu0 0.0
    %1366 = vmatpush.msra.mxu0 0.0
    %1367 = vmatpush.msra.mxu0 %v1348
    %1368 = vmatpush.msra.mxu0 %v1347
    %1369 = vmatpush.msra.mxu0 %v1346
    %1370 = vmatpush.msra.mxu0 %v1345
    %1371 = vmatpush.msra.mxu0 %v1344
    %1372 = vmatpush.msra.mxu0 %v1343
    %1373 = vmatpush.msra.mxu0 %v1342
    %1374 = vmatpush.msra.mxu0 %v1341
    %1375 = vmatmul.f32.gmra.mxu0 %v1354
    %v1376 = vpop.f32.mrf.mxu0
    %v1377 = vadd.f32 %v1351, %v1376
    %1378 = vmatmul.f32.gmra.mxu0 %v1357
    %v1379 = vpop.f32.mrf.mxu0
    %v1380 = vadd.f32 %v1351, %v1379
    %1381 = vdwg.mxu0
    %v1382 = vadd.f32 %v1377, %v1284
    %v1383 = vadd.f32 %v1380, %v1285
    %v1384 = vld [vmem:[%s63] sm:$0x1]
    %v1385 = vld [vmem:[%s65] sm:$0x1]
    %v1386 = vsel %vm246, %v1382, 0.0
    %1387 = vadd.xlane.f32.xlu0 %v1386
    %v1388 = vpop.xlane.xlu0 %1387
    %v1389 = vsel %vm246, %v1383, 0.0
    %1390 = vadd.xlane.f32.xlu0 %v1389
    %v1391 = vpop.xlane.xlu0 %1390
    %v1392 = vmul.f32 %v1388, %v259
    %v1393 = vmul.f32 %v1391, %v259
    %v1394 = vsub.f32 %v1382, %v1392
    %v1395 = vsub.f32 %v1383, %v1393
    %v1396 = vmul.f32 %v1394, %v1394
    %v1397 = vmul.f32 %v1395, %v1395
    %v1398 = vsel %vm246, %v1396, 0.0
    %1399 = vadd.xlane.f32.xlu0 %v1398
    %v1400 = vpop.xlane.xlu0 %1399
    %v1401 = vsel %vm246, %v1397, 0.0
    %1402 = vadd.xlane.f32.xlu0 %v1401
    %v1403 = vpop.xlane.xlu0 %1402
    %v1404 = vmul.f32 %v1400, %v259
    %v1405 = vmul.f32 %v1403, %v259
    %v1406 = vadd.f32 %v1404, 1e-12
    %v1407 = vadd.f32 %v1405, 1e-12
    %v1408 = vrsqrt.pop %v1406
    %v1409 = vmul.f32 %v1408, %v1406
    %v1410 = vmul.f32 %v1409, %v1408
    %v1411 = vmul.f32 0.5, %v1410
    %v1412 = vsub.f32 1.5, %v1411
    %v1413 = vmul.f32 %v1408, %v1412
    %vm1414 = vweird.f32 %v1406
    %vm1415 = vweird.f32 %v1408
    %vm1416 = vmor %vm1414, %vm1415
    %v1417 = vsel %vm1416, %v1408, %v1413
    %v1418 = vrsqrt.pop %v1407
    %v1419 = vmul.f32 %v1418, %v1407
    %v1420 = vmul.f32 %v1419, %v1418
    %v1421 = vmul.f32 0.5, %v1420
    %v1422 = vsub.f32 1.5, %v1421
    %v1423 = vmul.f32 %v1418, %v1422
    %vm1424 = vweird.f32 %v1407
    %vm1425 = vweird.f32 %v1418
    %vm1426 = vmor %vm1424, %vm1425
    %v1427 = vsel %vm1426, %v1418, %v1423
    %v1428 = vmul.f32 %v1394, %v1417
    %v1429 = vmul.f32 %v1395, %v1427
    %v1431 = vperm.slane %v1384, 0
    %v1433 = vmul.f32 %v1428, %v1431
    %v1434 = vmul.f32 %v1429, %v1431
    %v1436 = vperm.slane %v1385, 0
    %v1438 = vadd.f32 %v1433, %v1436
    %v1439 = vadd.f32 %v1434, %v1436
    %v1441 = vrot.slane %v1439, 7
    %vm1443 = vcmask 1040384
    %v1444 = vsel %vm1443, %v1438, %v1441
    %v1445 = vld [vmem:[%s67] sm:$0xff]
    %v1446 = vld [vmem:[%s67 + $0x8] sm:$0xff]
    %v1447 = vld [vmem:[%s67 + $0x10] sm:$0xff]
    %v1448 = vld [vmem:[%s67 + $0x18] sm:$0xff]
    %v1449 = vld [vmem:[%s69] sm:$0x1]
    %v1451 = vperm.slane %v1449, 0
    %v1454 = vsel %vm246, %v1444, 0
    %1456 = vmatpush.msra.mxu0 0.0
    %1457 = vmatpush.msra.mxu0 0.0
    %1458 = vmatpush.msra.mxu0 0.0
    %1459 = vmatpush.msra.mxu0 0.0
    %1460 = vmatpush.msra.mxu0 0.0
    %1461 = vmatpush.msra.mxu0 0.0
    %1462 = vmatpush.msra.mxu0 0.0
    %1463 = vmatpush.msra.mxu0 0.0
    %1464 = vmatpush.msra.mxu0 0.0
    %1465 = vmatpush.msra.mxu0 0.0
    %1466 = vmatpush.msra.mxu0 0.0
    %1467 = vmatpush.msra.mxu0 0.0
    %1468 = vmatpush.msra.mxu0 %v1448
    %1469 = vmatpush.msra.mxu0 %v1447
    %1470 = vmatpush.msra.mxu0 %v1446
    %1471 = vmatpush.msra.mxu0 %v1445
    %1472 = vmatmul.f32.gmra.mxu0 %v1454
    %v1473 = vpop.f32.mrf.mxu0
    %v1474 = vadd.f32 %v1451, %v1473
    %1475 = vdwg.mxu0
    %v1476 = vtanh.pop %v1474
    %v1477 = vld [vmem:[%s71] sm:$0xff]
    %v1478 = vld [vmem:[%s71 + $0x8] sm:$0xff]
    %v1479 = vld [vmem:[%s71 + $0x10] sm:$0xff]
    %v1480 = vld [vmem:[%s71 + $0x18] sm:$0xff]
    %v1481 = vld [vmem:[%s73] sm:$0x1]
    %v1483 = vperm.slane %v1481, 0
    %v1486 = vsel %vm246, %v1476, 0
    %1488 = vmatpush.msra.mxu0 0.0
    %1489 = vmatpush.msra.mxu0 0.0
    %1490 = vmatpush.msra.mxu0 0.0
    %1491 = vmatpush.msra.mxu0 0.0
    %1492 = vmatpush.msra.mxu0 0.0
    %1493 = vmatpush.msra.mxu0 0.0
    %1494 = vmatpush.msra.mxu0 0.0
    %1495 = vmatpush.msra.mxu0 0.0
    %1496 = vmatpush.msra.mxu0 0.0
    %1497 = vmatpush.msra.mxu0 0.0
    %1498 = vmatpush.msra.mxu0 0.0
    %1499 = vmatpush.msra.mxu0 0.0
    %1500 = vmatpush.msra.mxu0 %v1480
    %1501 = vmatpush.msra.mxu0 %v1479
    %1502 = vmatpush.msra.mxu0 %v1478
    %1503 = vmatpush.msra.mxu0 %v1477
    %1504 = vmatmul.f32.gmra.mxu0 %v1486
    %v1505 = vpop.f32.mrf.mxu0
    %v1506 = vadd.f32 %v1483, %v1505
    %1507 = vdwg.mxu0
    %v1508 = vld [vmem:[%s7] sm:$0x3]
    %1509 = vset.pattern.permute.xlu0 0
    %1510 = vperm.xlu0 %1509, %v1508
    %v1511 = vpop.permute.xlu0 %1510
    %vm1512 = vcmp.eq.s32.totalorder %v1511, %v162
    %v1513 = vsel %vm1512, 1, 0
    %v1514 = vcvt.s32.f32 %v1513
    %vm1515 = vcmask 9216
    %v1516 = vsel %vm1515, %v1506, -inf
    %1517 = vmax.xlane.f32.xlu0 %v1516
    %v1518 = vpop.xlane.xlu0 %1517
    %v1519 = vsub.f32 %v1506, %v1518
    %v1520 = vmul.f32 %v1519, 1.442695
    %v1521 = vpow.pop %v1520
    %v1522 = vsel %vm1515, %v1521, 0.0
    %1523 = vadd.xlane.f32.xlu0 %v1522
    %v1524 = vpop.xlane.xlu0 %1523
    %v1525 = vrcp.pop %v1524
    %v1526 = vmul.f32 %v1521, %v1525
    %v1527 = vlog2.pop %v1524
    %v1528 = vmul.f32 %v1527, 0.6931472
    %v1529 = vsub.f32 %v1519, %v1528
    %v1530 = vmul.f32 %v1514, %v1529
    %v1531 = vsel %vm1515, %v1530, 0.0
    %1532 = vadd.xlane.f32.xlu0 %v1531
    %v1533 = vpop.xlane.xlu0 %1532
    %v1534 = vsub.f32 0.0, %v1533
    %1535 = vst.msk [vmem:[#allocation4] sm:$0x3] %vm1515, %v1506
    %1536 = vst.msk [vmem:[#allocation6] sm:$0x3] %vm1515, %v1526
    %v1537 = vsel %vm215, %v1534, 0.0
    %v1538 = vrot.slane %v1537, 4
    %v1539 = vadd.f32 %v1537, %v1538
    %v1540 = vrot.slane %v1539, 2
    %v1541 = vadd.f32 %v1539, %v1540
    %v1542 = vrot.slane %v1541, 1
    %v1543 = vadd.f32 %v1541, %v1542
    %v1544 = vmul.f32 %v1543, 0.5
    %vm1545 = vcmask 0
    %1546 = vst.msk [vmem:[#allocation2] sm:$0x1] %vm1545, %v1544
    // Predicated region
    $region150: #{bert_forward.1} parent=1 // pred_check
      _
    $region151: #{bert_forward.1} parent=1 // pred_check_branch
      %1548 = sbr.rel (0) target = $region153
    $region152: #{bert_forward.1} parent=1 // pred_region
      %1550 = vsyncadd [#allocation3], 0
      %s1552 = sshll.u32 [#allocation2], 4
      %s1553 = int_to_ptr.vmem [resolvable:$true] %s1552
      %s1554 = sshll.u32 %s75, 4
      %s1555 = int_to_ptr.hbm [resolvable:$true] %s1554
      %1557 = dma.vmem_to_hbm [thread:$0]  %s1553, 16, %s1555, [#allocation3]
    $region153: #{bert_forward.1} parent=1 // pred_fallthru
      _
    // Predicated region
    $region154: #{bert_forward.1} parent=1 // pred_check
      _
    $region155: #{bert_forward.1} parent=1 // pred_check_branch
      %1559 = sbr.rel (0) target = $region157
    $region156: #{bert_forward.1} parent=1 // pred_region
      %1561 = vsyncadd [#allocation5], 0
      %s1563 = sshll.u32 [#allocation4], 4
      %s1564 = int_to_ptr.vmem [resolvable:$true] %s1563
      %s1565 = sshll.u32 %s77, 4
      %s1566 = int_to_ptr.hbm [resolvable:$true] %s1565
      %1568 = dma.vmem_to_hbm [thread:$0]  %s1564, 32, %s1566, [#allocation5]
    $region157: #{bert_forward.1} parent=1 // pred_fallthru
      _
    // Predicated region
    $region158: #{bert_forward.1} parent=1 // pred_check
      _
    $region159: #{bert_forward.1} parent=1 // pred_check_branch
      %1570 = sbr.rel (0) target = $region161
    $region160: #{bert_forward.1} parent=1 // pred_region
      %1572 = vsyncadd [#allocation5], 0
      %s1574 = sshll.u32 [#allocation6], 4
      %s1575 = int_to_ptr.vmem [resolvable:$true] %s1574
      %s1576 = sshll.u32 %s79, 4
      %s1577 = int_to_ptr.hbm [resolvable:$true] %s1576
      %1579 = dma.vmem_to_hbm [thread:$0]  %s1575, 32, %s1577, [#allocation5]
    $region161: #{bert_forward.1} parent=1 // pred_fallthru
      _
    // Predicated region
    $region162: #{bert_forward.1} parent=1 // pred_check
      _
    $region163: #{bert_forward.1} parent=1 // pred_check_branch
      %1581 = sbr.rel (0) target = $region165
    $region164: #{bert_forward.1} parent=1 // pred_region
      %1583 = dma.done [#allocation3], 16
    $region165: #{bert_forward.1} parent=1 // pred_fallthru
      _
    // Predicated region
    $region166: #{bert_forward.1} parent=1 // pred_check
      _
    $region167: #{bert_forward.1} parent=1 // pred_check_branch
      %1585 = sbr.rel (0) target = $region169
    $region168: #{bert_forward.1} parent=1 // pred_region
      %1587 = dma.done [#allocation5], 32
    $region169: #{bert_forward.1} parent=1 // pred_fallthru
      _
    // Predicated region
    $region170: #{bert_forward.1} parent=1 // pred_check
      _
    $region171: #{bert_forward.1} parent=1 // pred_check_branch
      %1589 = sbr.rel (0) target = $region173
    $region172: #{bert_forward.1} parent=1 // pred_region
      %1591 = dma.done [#allocation5], 32
    $region173: #{bert_forward.1} parent=1 // pred_fallthru
      _
    %1592 = vsyncpa [#allocation3], 1
    %1593 = vsyncpa [#allocation5], 1

</llo_original>
